<compile_context>
chip_gen: v5e
topology: v5e:2x2
jax: 0.10.0
libtpu: 0.0.40
codegen_flags: <defaults>
</compile_context>

<pallas_src>
import jax
import jax.numpy as jnp
from jax.experimental import pallas as pl
from jax.experimental.pallas import tpu as pltpu

LN_EPS = 1e-5  # PyTorch nn.LayerNorm default


def _gelu_exact(v):
    """Exact (erf-based) GELU, erf via A&S 7.1.26 polynomial (~1.5e-7 abs err)."""
    z = v * jnp.float32(0.7071067811865476)  # v / sqrt(2)
    az = jnp.abs(z)
    t = 1.0 / (1.0 + jnp.float32(0.3275911) * az)
    poly = t * (jnp.float32(0.254829592)
                + t * (jnp.float32(-0.284496736)
                       + t * (jnp.float32(1.421413741)
                              + t * (jnp.float32(-1.453152027)
                                     + t * jnp.float32(1.061405429)))))
    erf_abs = 1.0 - poly * jnp.exp(-az * az)   # exp -> EUP slot
    erf = jnp.where(z >= 0.0, erf_abs, -erf_abs)
    return 0.5 * v * (1.0 + erf)


def _make_mixer_kernel(C, S, T, Ch):
    """Build the kernel with all sizes / slab offsets baked in as Python ints."""
    # VMEM slab row offsets (slab shape (R, 1, S)).
    GAMMA = 0                  # C rows:  gamma[c, s] = ln_w[s, c]
    BETA = C                   # C rows:  beta[c, s]  = ln_b[s, c]
    W1R = 2 * C                # T rows:  W1[t, :]
    W2C = 2 * C + T            # T rows:  W2[:, t]
    B2 = 2 * C + 2 * T         # 1 row:   b2[:]
    # SMEM scalar offsets (flat f32 array).
    B1_OFF = 0                          # T scalars
    W3_OFF = B1_OFF + T                 # Ch*C scalars, W3[j, c] at j*C + c
    B3_OFF = W3_OFF + Ch * C            # Ch scalars
    W4_OFF = B3_OFF + Ch                # C*Ch scalars, W4[c, j] at c*Ch + j
    B4_OFF = W4_OFF + C * Ch            # C scalars
    inv_n = 1.0 / (S * C)

    def kernel(x_ref, slab_ref, sc_ref, o_ref):
        x = x_ref[...]                          # (C, N, S) f32
        slab = slab_ref[...]                    # (R, 1, S) f32
        gamma = slab[GAMMA:GAMMA + C]           # (C, 1, S)
        beta = slab[BETA:BETA + C]              # (C, 1, S)

        def layernorm(v):
            # Per-sample LN over (C, S).  Sum and sum-of-squares are two
            # independent reduce trees; var = E[v^2] - mu^2.
            s1 = jnp.sum(v, axis=2, keepdims=True)        # (C, N, 1) lane reduce
            s2 = jnp.sum(v * v, axis=2, keepdims=True)    # (C, N, 1) lane reduce
            s1 = jnp.sum(s1, axis=0, keepdims=True)       # (1, N, 1)
            s2 = jnp.sum(s2, axis=0, keepdims=True)       # (1, N, 1)
            mu = s1 * inv_n
            var = s2 * inv_n - mu * mu
            return (v - mu) * jax.lax.rsqrt(var + jnp.float32(LN_EPS)) * gamma + beta

        # ---- token-mixing MLP (mixes along S = lanes) ----
        # h_t[c,n]  = gelu(b1[t] + sum_s W1[t,s] * xn[c,n,s])   (lane reduce)
        # tok[c,n,s]= b2[s] + sum_t W2[s,t] * h_t[c,n]
        xn = layernorm(x)
        hs = []
        for t in range(T):
            w1row = slab[W1R + t:W1R + t + 1]                         # (1,1,S)
            ht = jnp.sum(xn * w1row, axis=2, keepdims=True)           # (C,N,1)
            hs.append(_gelu_exact(ht + sc_ref[B1_OFF + t]))
        tok_terms = [slab[W2C + t:W2C + t + 1] * hs[t] for t in range(T)]
        tok = slab[B2:B2 + 1] + sum(tok_terms)                        # (C,N,S)
        x1 = tok + x                                                  # residual 1

        # ---- channel-mixing MLP (mixes along C = leading dim, free slicing) ----
        # h_j[n,s] = gelu(b3[j] + sum_c W3[j,c] * xn2[c,n,s])
        # y_c[n,s] = b4[c] + sum_j W4[c,j] * h_j[n,s]
        xn2 = layernorm(x1)
        xcs = [xn2[c] for c in range(C)]                              # (N,S) each
        hcs = []
        for j in range(Ch):
            pre_terms = [sc_ref[W3_OFF + j * C + c] * xcs[c] for c in range(C)]
            hcs.append(_gelu_exact(sc_ref[B3_OFF + j] + sum(pre_terms)))
        for c in range(C):
            y_terms = [sc_ref[W4_OFF + c * Ch + j] * hcs[j] for j in range(Ch)]
            yc = sc_ref[B4_OFF + c] + sum(y_terms)                    # (N,S)
            o_ref[c, :, :] = (x1[c] + yc).astype(o_ref.dtype)         # residual 2

    return kernel


def mixer_block_pallas(x, params):
    """x: (N, S, C) float32. params: dict of torch-layout weights (see init)."""
    N, S, C = x.shape
    W1, b1 = params["tok_w1"], params["tok_b1"]       # (T, S), (T,)
    W2, b2 = params["tok_w2"], params["tok_b2"]       # (S, T), (S,)
    W3, b3 = params["ch_w1"], params["ch_b1"]         # (Ch, C), (Ch,)
    W4, b4 = params["ch_w2"], params["ch_b2"]         # (C, Ch), (C,)
    T = W1.shape[0]
    Ch = W3.shape[0]

    # Lane-dense layout: (N, S, C) -> (C, N, S).  S=25 on lanes, batch on
    # sublanes.  All layout plumbing happens here, never in-kernel.
    x_cns = jnp.transpose(x, (2, 0, 1)).astype(jnp.float32)

    # ONE packed VMEM slab for every lane-shaped weight row.
    slab = jnp.concatenate([
        params["ln_w"].T,          # (C, S)  gamma[c, s]
        params["ln_b"].T,          # (C, S)  beta[c, s]
        W1,                        # (T, S)  W1[t, :]
        W2.T,                      # (T, S)  W2[:, t]
        b2.reshape(1, S),          # (1, S)
    ], axis=0).astype(jnp.float32).reshape(-1, 1, S)
    R = slab.shape[0]              # = 2*C + 2*T + 1

    # ONE flat SMEM array for every scalar-shaped weight.
    scal = jnp.concatenate([
        b1.reshape(-1), W3.reshape(-1), b3.reshape(-1),
        W4.reshape(-1), b4.reshape(-1),
    ]).astype(jnp.float32)

    kernel = _make_mixer_kernel(C, S, T, Ch)

    out_cns = pl.pallas_call(
        kernel,
        out_shape=jax.ShapeDtypeStruct((C, N, S), jnp.float32),
        grid=(1,),                               # whole batch, one step (all gens)
        in_specs=[
            pl.BlockSpec((C, N, S), lambda i: (0, 0, 0)),     # x
            pl.BlockSpec((R, 1, S), lambda i: (0, 0, 0)),     # weight slab
            pl.BlockSpec(memory_space=pltpu.MemorySpace.SMEM),  # scalar weights
        ],
        out_specs=pl.BlockSpec((C, N, S), lambda i: (0, 0, 0)),
        compiler_params=pltpu.CompilerParams(
            dimension_semantics=("arbitrary",)),
    )(x_cns, slab, scal)

    # Back to the module's (N, S, C) layout (wrapper-side, outside the kernel).
    return jnp.transpose(out_cns, (1, 2, 0))


def mixer_block_ref(x, params):
    """Pure-JAX reference mirroring the PyTorch MixerBlock.forward."""
    g, b = params["ln_w"], params["ln_b"]
    W1, b1 = params["tok_w1"], params["tok_b1"]
    W2, b2 = params["tok_w2"], params["tok_b2"]
    W3, b3 = params["ch_w1"], params["ch_b1"]
    W4, b4 = params["ch_w2"], params["ch_b2"]

    def ln(v):
        mu = jnp.mean(v, axis=(1, 2), keepdims=True)
        var = jnp.mean((v - mu) ** 2, axis=(1, 2), keepdims=True)
        return (v - mu) / jnp.sqrt(var + LN_EPS) * g + b

    def gelu(v):
        return 0.5 * v * (1.0 + jax.scipy.special.erf(v / jnp.sqrt(2.0)))

    out = ln(x)
    out = jnp.swapaxes(out, 1, 2)                       # (N, C, S)
    out = gelu(out @ W1.T + b1) @ W2.T + b2             # token MLP
    out = jnp.swapaxes(out, 1, 2)                       # (N, S, C)
    x1 = out + x
    out = ln(x1)
    return x1 + (gelu(out @ W3.T + b3) @ W4.T + b4)     # channel MLP


def init_params(key, S, C, T, Ch):
    """Deterministic init matching the PyTorch module's parameter shapes."""
    ks = jax.random.split(key, 8)

    def lin(kw, kb, out_dim, in_dim):
        bound = 1.0 / jnp.sqrt(in_dim)
        w = jax.random.uniform(kw, (out_dim, in_dim), jnp.float32, -bound, bound)
        bb = jax.random.uniform(kb, (out_dim,), jnp.float32, -bound, bound)
        return w, bb

    tok_w1, tok_b1 = lin(ks[0], ks[1], T, S)     # MlpBlock_1.lin1: Linear(S -> T)
    tok_w2, tok_b2 = lin(ks[2], ks[3], S, T)     # MlpBlock_1.lin2: Linear(T -> S)
    ch_w1, ch_b1 = lin(ks[4], ks[5], Ch, C)      # MlpBlock_2.lin1: Linear(C -> Ch)
    ch_w2, ch_b2 = lin(ks[6], ks[7], C, Ch)      # MlpBlock_2.lin2: Linear(Ch -> C)
    return dict(
        ln_w=jnp.ones((S, C), jnp.float32),      # nn.LayerNorm([S, C]) defaults
        ln_b=jnp.zeros((S, C), jnp.float32),
        tok_w1=tok_w1, tok_b1=tok_b1, tok_w2=tok_w2, tok_b2=tok_b2,
        ch_w1=ch_w1, ch_b1=ch_b1, ch_w2=ch_w2, ch_b2=ch_b2,
    )


if __name__ == "__main__":
    # Shapes implied by the module: layout_size=(15,15), patch=(3,3) ->
    # num_patches S = 5*5 = 25, hidden_dim C = 3, tokens T = 3, channels Ch = 3.
    N, S, C, T, Ch = 8, 25, 3, 3, 3

    key = jax.random.PRNGKey(0)
    kx, kp = jax.random.split(key)
    x = jax.random.normal(kx, (N, S, C), dtype=jnp.float32)
    params = init_params(kp, S, C, T, Ch)

    out = mixer_block_pallas(x, params)      # whole batch in one grid step
    out = jax.block_until_ready(out)

    ref = mixer_block_ref(x, params)
    assert out.shape == (N, S, C)
    assert jnp.allclose(out, ref, atol=1e-4, rtol=1e-4), (
        float(jnp.max(jnp.abs(out - ref))))

    print("KERNEL_OK")
</pallas_src>

<mosaic_0001>
module attributes {stable_mosaic.version = 11 : i64} {
  func.func @kernel(%arg0: i32, %arg1: memref<3x8x25xf32, #tpu.memory_space<vmem>>, %arg2: memref<13x1x25xf32, #tpu.memory_space<vmem>>, %arg3: memref<27xf32, #tpu.memory_space<smem>>, %arg4: memref<3x8x25xf32, #tpu.memory_space<vmem>>) attributes {dimension_semantics = [#tpu.dimension_semantics<arbitrary>], iteration_bounds = array<i64: 1>, scalar_prefetch = 0 : i64, scratch_operands = 0 : i64, tpu.core_type = #tpu.core_type<tc>, window_params = [{pipeline_mode = #tpu.pipeline_mode<synchronous>, transform_indices = @transform_0, window_bounds = array<i64: 3, 8, 25>}, {pipeline_mode = #tpu.pipeline_mode<synchronous>, transform_indices = @transform_1, window_bounds = array<i64: 13, 1, 25>}, {transform_indices = @transform_2, window_bounds = array<i64: 27>}, {pipeline_mode = #tpu.pipeline_mode<synchronous>, transform_indices = @transform_3, window_bounds = array<i64: 3, 8, 25>}]} {
    %c0 = arith.constant 0 : index
    %c0_0 = arith.constant 0 : index
    %c0_1 = arith.constant 0 : index
    %0 = vector.load %arg1[%c0, %c0_0, %c0_1] : memref<3x8x25xf32, #tpu.memory_space<vmem>>, vector<3x8x25xf32>
    %c0_2 = arith.constant 0 : index
    %c0_3 = arith.constant 0 : index
    %c0_4 = arith.constant 0 : index
    %1 = vector.load %arg2[%c0_2, %c0_3, %c0_4] : memref<13x1x25xf32, #tpu.memory_space<vmem>>, vector<13x1x25xf32>
    %2 = vector.extract_strided_slice %1 {offsets = [0, 0, 0], sizes = [3, 1, 25], strides = [1, 1, 1]} : vector<13x1x25xf32> to vector<3x1x25xf32>
    %3 = vector.extract_strided_slice %1 {offsets = [3, 0, 0], sizes = [3, 1, 25], strides = [1, 1, 1]} : vector<13x1x25xf32> to vector<3x1x25xf32>
    %cst = arith.constant dense<0.000000e+00> : vector<3x8xf32>
    %4 = vector.multi_reduction <add>, %0, %cst [2] : vector<3x8x25xf32> to vector<3x8xf32>
    %5 = vector.shape_cast %4 : vector<3x8xf32> to vector<3x8x1xf32>
    %6 = arith.mulf %0, %0 : vector<3x8x25xf32>
    %cst_5 = arith.constant dense<0.000000e+00> : vector<3x8xf32>
    %7 = vector.multi_reduction <add>, %6, %cst_5 [2] : vector<3x8x25xf32> to vector<3x8xf32>
    %8 = vector.shape_cast %7 : vector<3x8xf32> to vector<3x8x1xf32>
    %cst_6 = arith.constant dense<0.000000e+00> : vector<8x1xf32>
    %9 = vector.multi_reduction <add>, %5, %cst_6 [0] : vector<3x8x1xf32> to vector<8x1xf32>
    %10 = vector.shape_cast %9 : vector<8x1xf32> to vector<1x8x1xf32>
    %cst_7 = arith.constant dense<0.000000e+00> : vector<8x1xf32>
    %11 = vector.multi_reduction <add>, %8, %cst_7 [0] : vector<3x8x1xf32> to vector<8x1xf32>
    %12 = vector.shape_cast %11 : vector<8x1xf32> to vector<1x8x1xf32>
    %cst_8 = arith.constant 0.0133333337 : f32
    %13 = vector.broadcast %cst_8 : f32 to vector<1x8x1xf32>
    %14 = arith.mulf %10, %13 : vector<1x8x1xf32>
    %cst_9 = arith.constant 0.0133333337 : f32
    %15 = vector.broadcast %cst_9 : f32 to vector<1x8x1xf32>
    %16 = arith.mulf %12, %15 : vector<1x8x1xf32>
    %17 = arith.mulf %14, %14 : vector<1x8x1xf32>
    %18 = arith.subf %16, %17 : vector<1x8x1xf32>
    %19 = vector.broadcast %14 : vector<1x8x1xf32> to vector<3x8x25xf32>
    %20 = arith.subf %0, %19 : vector<3x8x25xf32>
    %cst_10 = arith.constant 9.99999974E-6 : f32
    %21 = vector.broadcast %cst_10 : f32 to vector<1x8x1xf32>
    %22 = arith.addf %18, %21 : vector<1x8x1xf32>
    %23 = math.rsqrt %22 : vector<1x8x1xf32>
    %24 = vector.broadcast %23 : vector<1x8x1xf32> to vector<3x8x25xf32>
    %25 = arith.mulf %20, %24 : vector<3x8x25xf32>
    %26 = vector.broadcast %2 : vector<3x1x25xf32> to vector<3x8x25xf32>
    %27 = arith.mulf %25, %26 : vector<3x8x25xf32>
    %28 = vector.broadcast %3 : vector<3x1x25xf32> to vector<3x8x25xf32>
    %29 = arith.addf %27, %28 : vector<3x8x25xf32>
    %30 = vector.extract_strided_slice %1 {offsets = [6, 0, 0], sizes = [1, 1, 25], strides = [1, 1, 1]} : vector<13x1x25xf32> to vector<1x1x25xf32>
    %31 = vector.broadcast %30 : vector<1x1x25xf32> to vector<3x8x25xf32>
    %32 = arith.mulf %29, %31 : vector<3x8x25xf32>
    %cst_11 = arith.constant dense<0.000000e+00> : vector<3x8xf32>
    %33 = vector.multi_reduction <add>, %32, %cst_11 [2] : vector<3x8x25xf32> to vector<3x8xf32>
    %34 = vector.shape_cast %33 : vector<3x8xf32> to vector<3x8x1xf32>
    %c0_12 = arith.constant 0 : index
    %35 = memref.load %arg3[%c0_12] : memref<27xf32, #tpu.memory_space<smem>>
    %36 = vector.broadcast %35 : f32 to vector<3x8x1xf32>
    %37 = arith.addf %34, %36 : vector<3x8x1xf32>
    %cst_13 = arith.constant 0.707106769 : f32
    %38 = vector.broadcast %cst_13 : f32 to vector<3x8x1xf32>
    %39 = arith.mulf %37, %38 : vector<3x8x1xf32>
    %40 = math.absf %39 : vector<3x8x1xf32>
    %cst_14 = arith.constant 0.327591091 : f32
    %41 = vector.broadcast %cst_14 : f32 to vector<3x8x1xf32>
    %42 = arith.mulf %41, %40 : vector<3x8x1xf32>
    %cst_15 = arith.constant 1.000000e+00 : f32
    %43 = vector.broadcast %cst_15 : f32 to vector<3x8x1xf32>
    %44 = arith.addf %43, %42 : vector<3x8x1xf32>
    %cst_16 = arith.constant 1.000000e+00 : f32
    %45 = vector.broadcast %cst_16 : f32 to vector<3x8x1xf32>
    %46 = arith.divf %45, %44 : vector<3x8x1xf32>
    %cst_17 = arith.constant 1.06140542 : f32
    %47 = vector.broadcast %cst_17 : f32 to vector<3x8x1xf32>
    %48 = arith.mulf %46, %47 : vector<3x8x1xf32>
    %cst_18 = arith.constant -1.45315206 : f32
    %49 = vector.broadcast %cst_18 : f32 to vector<3x8x1xf32>
    %50 = arith.addf %49, %48 : vector<3x8x1xf32>
    %51 = arith.mulf %46, %50 : vector<3x8x1xf32>
    %cst_19 = arith.constant 1.42141378 : f32
    %52 = vector.broadcast %cst_19 : f32 to vector<3x8x1xf32>
    %53 = arith.addf %52, %51 : vector<3x8x1xf32>
    %54 = arith.mulf %46, %53 : vector<3x8x1xf32>
    %cst_20 = arith.constant -0.284496725 : f32
    %55 = vector.broadcast %cst_20 : f32 to vector<3x8x1xf32>
    %56 = arith.addf %55, %54 : vector<3x8x1xf32>
    %57 = arith.mulf %46, %56 : vector<3x8x1xf32>
    %cst_21 = arith.constant 0.254829586 : f32
    %58 = vector.broadcast %cst_21 : f32 to vector<3x8x1xf32>
    %59 = arith.addf %58, %57 : vector<3x8x1xf32>
    %60 = arith.mulf %46, %59 : vector<3x8x1xf32>
    %cst_22 = arith.constant 0.000000e+00 : f32
    %61 = vector.broadcast %cst_22 : f32 to vector<3x8x1xf32>
    %62 = arith.subf %61, %40 : vector<3x8x1xf32>
    %63 = arith.mulf %62, %40 : vector<3x8x1xf32>
    %64 = math.exp %63 : vector<3x8x1xf32>
    %65 = arith.mulf %60, %64 : vector<3x8x1xf32>
    %cst_23 = arith.constant 1.000000e+00 : f32
    %66 = vector.broadcast %cst_23 : f32 to vector<3x8x1xf32>
    %67 = arith.subf %66, %65 : vector<3x8x1xf32>
    %cst_24 = arith.constant 0.000000e+00 : f32
    %68 = vector.broadcast %cst_24 : f32 to vector<3x8x1xf32>
    %69 = arith.cmpf oge, %39, %68 : vector<3x8x1xf32>
    %cst_25 = arith.constant 0.000000e+00 : f32
    %70 = vector.broadcast %cst_25 : f32 to vector<3x8x1xf32>
    %71 = arith.subf %70, %67 : vector<3x8x1xf32>
    %72 = arith.select %69, %67, %71 : vector<3x8x1xi1>, vector<3x8x1xf32>
    %cst_26 = arith.constant 5.000000e-01 : f32
    %73 = vector.broadcast %cst_26 : f32 to vector<3x8x1xf32>
    %74 = arith.mulf %73, %37 : vector<3x8x1xf32>
    %cst_27 = arith.constant 1.000000e+00 : f32
    %75 = vector.broadcast %cst_27 : f32 to vector<3x8x1xf32>
    %76 = arith.addf %75, %72 : vector<3x8x1xf32>
    %77 = arith.mulf %74, %76 : vector<3x8x1xf32>
    %78 = vector.extract_strided_slice %1 {offsets = [7, 0, 0], sizes = [1, 1, 25], strides = [1, 1, 1]} : vector<13x1x25xf32> to vector<1x1x25xf32>
    %79 = vector.broadcast %78 : vector<1x1x25xf32> to vector<3x8x25xf32>
    %80 = arith.mulf %29, %79 : vector<3x8x25xf32>
    %cst_28 = arith.constant dense<0.000000e+00> : vector<3x8xf32>
    %81 = vector.multi_reduction <add>, %80, %cst_28 [2] : vector<3x8x25xf32> to vector<3x8xf32>
    %82 = vector.shape_cast %81 : vector<3x8xf32> to vector<3x8x1xf32>
    %c1 = arith.constant 1 : index
    %83 = memref.load %arg3[%c1] : memref<27xf32, #tpu.memory_space<smem>>
    %84 = vector.broadcast %83 : f32 to vector<3x8x1xf32>
    %85 = arith.addf %82, %84 : vector<3x8x1xf32>
    %cst_29 = arith.constant 0.707106769 : f32
    %86 = vector.broadcast %cst_29 : f32 to vector<3x8x1xf32>
    %87 = arith.mulf %85, %86 : vector<3x8x1xf32>
    %88 = math.absf %87 : vector<3x8x1xf32>
    %cst_30 = arith.constant 0.327591091 : f32
    %89 = vector.broadcast %cst_30 : f32 to vector<3x8x1xf32>
    %90 = arith.mulf %89, %88 : vector<3x8x1xf32>
    %cst_31 = arith.constant 1.000000e+00 : f32
    %91 = vector.broadcast %cst_31 : f32 to vector<3x8x1xf32>
    %92 = arith.addf %91, %90 : vector<3x8x1xf32>
    %cst_32 = arith.constant 1.000000e+00 : f32
    %93 = vector.broadcast %cst_32 : f32 to vector<3x8x1xf32>
    %94 = arith.divf %93, %92 : vector<3x8x1xf32>
    %cst_33 = arith.constant 1.06140542 : f32
    %95 = vector.broadcast %cst_33 : f32 to vector<3x8x1xf32>
    %96 = arith.mulf %94, %95 : vector<3x8x1xf32>
    %cst_34 = arith.constant -1.45315206 : f32
    %97 = vector.broadcast %cst_34 : f32 to vector<3x8x1xf32>
    %98 = arith.addf %97, %96 : vector<3x8x1xf32>
    %99 = arith.mulf %94, %98 : vector<3x8x1xf32>
    %cst_35 = arith.constant 1.42141378 : f32
    %100 = vector.broadcast %cst_35 : f32 to vector<3x8x1xf32>
    %101 = arith.addf %100, %99 : vector<3x8x1xf32>
    %102 = arith.mulf %94, %101 : vector<3x8x1xf32>
    %cst_36 = arith.constant -0.284496725 : f32
    %103 = vector.broadcast %cst_36 : f32 to vector<3x8x1xf32>
    %104 = arith.addf %103, %102 : vector<3x8x1xf32>
    %105 = arith.mulf %94, %104 : vector<3x8x1xf32>
    %cst_37 = arith.constant 0.254829586 : f32
    %106 = vector.broadcast %cst_37 : f32 to vector<3x8x1xf32>
    %107 = arith.addf %106, %105 : vector<3x8x1xf32>
    %108 = arith.mulf %94, %107 : vector<3x8x1xf32>
    %cst_38 = arith.constant 0.000000e+00 : f32
    %109 = vector.broadcast %cst_38 : f32 to vector<3x8x1xf32>
    %110 = arith.subf %109, %88 : vector<3x8x1xf32>
    %111 = arith.mulf %110, %88 : vector<3x8x1xf32>
    %112 = math.exp %111 : vector<3x8x1xf32>
    %113 = arith.mulf %108, %112 : vector<3x8x1xf32>
    %cst_39 = arith.constant 1.000000e+00 : f32
    %114 = vector.broadcast %cst_39 : f32 to vector<3x8x1xf32>
    %115 = arith.subf %114, %113 : vector<3x8x1xf32>
    %cst_40 = arith.constant 0.000000e+00 : f32
    %116 = vector.broadcast %cst_40 : f32 to vector<3x8x1xf32>
    %117 = arith.cmpf oge, %87, %116 : vector<3x8x1xf32>
    %cst_41 = arith.constant 0.000000e+00 : f32
    %118 = vector.broadcast %cst_41 : f32 to vector<3x8x1xf32>
    %119 = arith.subf %118, %115 : vector<3x8x1xf32>
    %120 = arith.select %117, %115, %119 : vector<3x8x1xi1>, vector<3x8x1xf32>
    %cst_42 = arith.constant 5.000000e-01 : f32
    %121 = vector.broadcast %cst_42 : f32 to vector<3x8x1xf32>
    %122 = arith.mulf %121, %85 : vector<3x8x1xf32>
    %cst_43 = arith.constant 1.000000e+00 : f32
    %123 = vector.broadcast %cst_43 : f32 to vector<3x8x1xf32>
    %124 = arith.addf %123, %120 : vector<3x8x1xf32>
    %125 = arith.mulf %122, %124 : vector<3x8x1xf32>
    %126 = vector.extract_strided_slice %1 {offsets = [8, 0, 0], sizes = [1, 1, 25], strides = [1, 1, 1]} : vector<13x1x25xf32> to vector<1x1x25xf32>
    %127 = vector.broadcast %126 : vector<1x1x25xf32> to vector<3x8x25xf32>
    %128 = arith.mulf %29, %127 : vector<3x8x25xf32>
    %cst_44 = arith.constant dense<0.000000e+00> : vector<3x8xf32>
    %129 = vector.multi_reduction <add>, %128, %cst_44 [2] : vector<3x8x25xf32> to vector<3x8xf32>
    %130 = vector.shape_cast %129 : vector<3x8xf32> to vector<3x8x1xf32>
    %c2 = arith.constant 2 : index
    %131 = memref.load %arg3[%c2] : memref<27xf32, #tpu.memory_space<smem>>
    %132 = vector.broadcast %131 : f32 to vector<3x8x1xf32>
    %133 = arith.addf %130, %132 : vector<3x8x1xf32>
    %cst_45 = arith.constant 0.707106769 : f32
    %134 = vector.broadcast %cst_45 : f32 to vector<3x8x1xf32>
    %135 = arith.mulf %133, %134 : vector<3x8x1xf32>
    %136 = math.absf %135 : vector<3x8x1xf32>
    %cst_46 = arith.constant 0.327591091 : f32
    %137 = vector.broadcast %cst_46 : f32 to vector<3x8x1xf32>
    %138 = arith.mulf %137, %136 : vector<3x8x1xf32>
    %cst_47 = arith.constant 1.000000e+00 : f32
    %139 = vector.broadcast %cst_47 : f32 to vector<3x8x1xf32>
    %140 = arith.addf %139, %138 : vector<3x8x1xf32>
    %cst_48 = arith.constant 1.000000e+00 : f32
    %141 = vector.broadcast %cst_48 : f32 to vector<3x8x1xf32>
    %142 = arith.divf %141, %140 : vector<3x8x1xf32>
    %cst_49 = arith.constant 1.06140542 : f32
    %143 = vector.broadcast %cst_49 : f32 to vector<3x8x1xf32>
    %144 = arith.mulf %142, %143 : vector<3x8x1xf32>
    %cst_50 = arith.constant -1.45315206 : f32
    %145 = vector.broadcast %cst_50 : f32 to vector<3x8x1xf32>
    %146 = arith.addf %145, %144 : vector<3x8x1xf32>
    %147 = arith.mulf %142, %146 : vector<3x8x1xf32>
    %cst_51 = arith.constant 1.42141378 : f32
    %148 = vector.broadcast %cst_51 : f32 to vector<3x8x1xf32>
    %149 = arith.addf %148, %147 : vector<3x8x1xf32>
    %150 = arith.mulf %142, %149 : vector<3x8x1xf32>
    %cst_52 = arith.constant -0.284496725 : f32
    %151 = vector.broadcast %cst_52 : f32 to vector<3x8x1xf32>
    %152 = arith.addf %151, %150 : vector<3x8x1xf32>
    %153 = arith.mulf %142, %152 : vector<3x8x1xf32>
    %cst_53 = arith.constant 0.254829586 : f32
    %154 = vector.broadcast %cst_53 : f32 to vector<3x8x1xf32>
    %155 = arith.addf %154, %153 : vector<3x8x1xf32>
    %156 = arith.mulf %142, %155 : vector<3x8x1xf32>
    %cst_54 = arith.constant 0.000000e+00 : f32
    %157 = vector.broadcast %cst_54 : f32 to vector<3x8x1xf32>
    %158 = arith.subf %157, %136 : vector<3x8x1xf32>
    %159 = arith.mulf %158, %136 : vector<3x8x1xf32>
    %160 = math.exp %159 : vector<3x8x1xf32>
    %161 = arith.mulf %156, %160 : vector<3x8x1xf32>
    %cst_55 = arith.constant 1.000000e+00 : f32
    %162 = vector.broadcast %cst_55 : f32 to vector<3x8x1xf32>
    %163 = arith.subf %162, %161 : vector<3x8x1xf32>
    %cst_56 = arith.constant 0.000000e+00 : f32
    %164 = vector.broadcast %cst_56 : f32 to vector<3x8x1xf32>
    %165 = arith.cmpf oge, %135, %164 : vector<3x8x1xf32>
    %cst_57 = arith.constant 0.000000e+00 : f32
    %166 = vector.broadcast %cst_57 : f32 to vector<3x8x1xf32>
    %167 = arith.subf %166, %163 : vector<3x8x1xf32>
    %168 = arith.select %165, %163, %167 : vector<3x8x1xi1>, vector<3x8x1xf32>
    %cst_58 = arith.constant 5.000000e-01 : f32
    %169 = vector.broadcast %cst_58 : f32 to vector<3x8x1xf32>
    %170 = arith.mulf %169, %133 : vector<3x8x1xf32>
    %cst_59 = arith.constant 1.000000e+00 : f32
    %171 = vector.broadcast %cst_59 : f32 to vector<3x8x1xf32>
    %172 = arith.addf %171, %168 : vector<3x8x1xf32>
    %173 = arith.mulf %170, %172 : vector<3x8x1xf32>
    %174 = vector.extract_strided_slice %1 {offsets = [9, 0, 0], sizes = [1, 1, 25], strides = [1, 1, 1]} : vector<13x1x25xf32> to vector<1x1x25xf32>
    %175 = vector.broadcast %174 : vector<1x1x25xf32> to vector<3x8x25xf32>
    %176 = vector.broadcast %77 : vector<3x8x1xf32> to vector<3x8x25xf32>
    %177 = arith.mulf %175, %176 : vector<3x8x25xf32>
    %178 = vector.extract_strided_slice %1 {offsets = [10, 0, 0], sizes = [1, 1, 25], strides = [1, 1, 1]} : vector<13x1x25xf32> to vector<1x1x25xf32>
    %179 = vector.broadcast %178 : vector<1x1x25xf32> to vector<3x8x25xf32>
    %180 = vector.broadcast %125 : vector<3x8x1xf32> to vector<3x8x25xf32>
    %181 = arith.mulf %179, %180 : vector<3x8x25xf32>
    %182 = vector.extract_strided_slice %1 {offsets = [11, 0, 0], sizes = [1, 1, 25], strides = [1, 1, 1]} : vector<13x1x25xf32> to vector<1x1x25xf32>
    %183 = vector.broadcast %182 : vector<1x1x25xf32> to vector<3x8x25xf32>
    %184 = vector.broadcast %173 : vector<3x8x1xf32> to vector<3x8x25xf32>
    %185 = arith.mulf %183, %184 : vector<3x8x25xf32>
    %186 = vector.extract_strided_slice %1 {offsets = [12, 0, 0], sizes = [1, 1, 25], strides = [1, 1, 1]} : vector<13x1x25xf32> to vector<1x1x25xf32>
    %cst_60 = arith.constant 0.000000e+00 : f32
    %187 = vector.broadcast %cst_60 : f32 to vector<3x8x25xf32>
    %188 = arith.addf %187, %177 : vector<3x8x25xf32>
    %189 = arith.addf %188, %181 : vector<3x8x25xf32>
    %190 = arith.addf %189, %185 : vector<3x8x25xf32>
    %191 = vector.broadcast %186 : vector<1x1x25xf32> to vector<3x8x25xf32>
    %192 = arith.addf %191, %190 : vector<3x8x25xf32>
    %193 = arith.addf %192, %0 : vector<3x8x25xf32>
    %cst_61 = arith.constant dense<0.000000e+00> : vector<3x8xf32>
    %194 = vector.multi_reduction <add>, %193, %cst_61 [2] : vector<3x8x25xf32> to vector<3x8xf32>
    %195 = vector.shape_cast %194 : vector<3x8xf32> to vector<3x8x1xf32>
    %196 = arith.mulf %193, %193 : vector<3x8x25xf32>
    %cst_62 = arith.constant dense<0.000000e+00> : vector<3x8xf32>
    %197 = vector.multi_reduction <add>, %196, %cst_62 [2] : vector<3x8x25xf32> to vector<3x8xf32>
    %198 = vector.shape_cast %197 : vector<3x8xf32> to vector<3x8x1xf32>
    %cst_63 = arith.constant dense<0.000000e+00> : vector<8x1xf32>
    %199 = vector.multi_reduction <add>, %195, %cst_63 [0] : vector<3x8x1xf32> to vector<8x1xf32>
    %200 = vector.shape_cast %199 : vector<8x1xf32> to vector<1x8x1xf32>
    %cst_64 = arith.constant dense<0.000000e+00> : vector<8x1xf32>
    %201 = vector.multi_reduction <add>, %198, %cst_64 [0] : vector<3x8x1xf32> to vector<8x1xf32>
    %202 = vector.shape_cast %201 : vector<8x1xf32> to vector<1x8x1xf32>
    %cst_65 = arith.constant 0.0133333337 : f32
    %203 = vector.broadcast %cst_65 : f32 to vector<1x8x1xf32>
    %204 = arith.mulf %200, %203 : vector<1x8x1xf32>
    %cst_66 = arith.constant 0.0133333337 : f32
    %205 = vector.broadcast %cst_66 : f32 to vector<1x8x1xf32>
    %206 = arith.mulf %202, %205 : vector<1x8x1xf32>
    %207 = arith.mulf %204, %204 : vector<1x8x1xf32>
    %208 = arith.subf %206, %207 : vector<1x8x1xf32>
    %209 = vector.broadcast %204 : vector<1x8x1xf32> to vector<3x8x25xf32>
    %210 = arith.subf %193, %209 : vector<3x8x25xf32>
    %cst_67 = arith.constant 9.99999974E-6 : f32
    %211 = vector.broadcast %cst_67 : f32 to vector<1x8x1xf32>
    %212 = arith.addf %208, %211 : vector<1x8x1xf32>
    %213 = math.rsqrt %212 : vector<1x8x1xf32>
    %214 = vector.broadcast %213 : vector<1x8x1xf32> to vector<3x8x25xf32>
    %215 = arith.mulf %210, %214 : vector<3x8x25xf32>
    %216 = vector.broadcast %2 : vector<3x1x25xf32> to vector<3x8x25xf32>
    %217 = arith.mulf %215, %216 : vector<3x8x25xf32>
    %218 = vector.broadcast %3 : vector<3x1x25xf32> to vector<3x8x25xf32>
    %219 = arith.addf %217, %218 : vector<3x8x25xf32>
    %220 = vector.extract_strided_slice %219 {offsets = [0, 0, 0], sizes = [1, 8, 25], strides = [1, 1, 1]} : vector<3x8x25xf32> to vector<1x8x25xf32>
    %221 = vector.shape_cast %220 : vector<1x8x25xf32> to vector<8x25xf32>
    %222 = vector.extract_strided_slice %219 {offsets = [1, 0, 0], sizes = [1, 8, 25], strides = [1, 1, 1]} : vector<3x8x25xf32> to vector<1x8x25xf32>
    %223 = vector.shape_cast %222 : vector<1x8x25xf32> to vector<8x25xf32>
    %224 = vector.extract_strided_slice %219 {offsets = [2, 0, 0], sizes = [1, 8, 25], strides = [1, 1, 1]} : vector<3x8x25xf32> to vector<1x8x25xf32>
    %225 = vector.shape_cast %224 : vector<1x8x25xf32> to vector<8x25xf32>
    %c3 = arith.constant 3 : index
    %226 = memref.load %arg3[%c3] : memref<27xf32, #tpu.memory_space<smem>>
    %227 = vector.broadcast %226 : f32 to vector<8x25xf32>
    %228 = arith.mulf %227, %221 : vector<8x25xf32>
    %c4 = arith.constant 4 : index
    %229 = memref.load %arg3[%c4] : memref<27xf32, #tpu.memory_space<smem>>
    %230 = vector.broadcast %229 : f32 to vector<8x25xf32>
    %231 = arith.mulf %230, %223 : vector<8x25xf32>
    %c5 = arith.constant 5 : index
    %232 = memref.load %arg3[%c5] : memref<27xf32, #tpu.memory_space<smem>>
    %233 = vector.broadcast %232 : f32 to vector<8x25xf32>
    %234 = arith.mulf %233, %225 : vector<8x25xf32>
    %c12 = arith.constant 12 : index
    %235 = memref.load %arg3[%c12] : memref<27xf32, #tpu.memory_space<smem>>
    %cst_68 = arith.constant 0.000000e+00 : f32
    %236 = vector.broadcast %cst_68 : f32 to vector<8x25xf32>
    %237 = arith.addf %236, %228 : vector<8x25xf32>
    %238 = arith.addf %237, %231 : vector<8x25xf32>
    %239 = arith.addf %238, %234 : vector<8x25xf32>
    %240 = vector.broadcast %235 : f32 to vector<8x25xf32>
    %241 = arith.addf %240, %239 : vector<8x25xf32>
    %cst_69 = arith.constant 0.707106769 : f32
    %242 = vector.broadcast %cst_69 : f32 to vector<8x25xf32>
    %243 = arith.mulf %241, %242 : vector<8x25xf32>
    %244 = math.absf %243 : vector<8x25xf32>
    %cst_70 = arith.constant 0.327591091 : f32
    %245 = vector.broadcast %cst_70 : f32 to vector<8x25xf32>
    %246 = arith.mulf %245, %244 : vector<8x25xf32>
    %cst_71 = arith.constant 1.000000e+00 : f32
    %247 = vector.broadcast %cst_71 : f32 to vector<8x25xf32>
    %248 = arith.addf %247, %246 : vector<8x25xf32>
    %cst_72 = arith.constant 1.000000e+00 : f32
    %249 = vector.broadcast %cst_72 : f32 to vector<8x25xf32>
    %250 = arith.divf %249, %248 : vector<8x25xf32>
    %cst_73 = arith.constant 1.06140542 : f32
    %251 = vector.broadcast %cst_73 : f32 to vector<8x25xf32>
    %252 = arith.mulf %250, %251 : vector<8x25xf32>
    %cst_74 = arith.constant -1.45315206 : f32
    %253 = vector.broadcast %cst_74 : f32 to vector<8x25xf32>
    %254 = arith.addf %253, %252 : vector<8x25xf32>
    %255 = arith.mulf %250, %254 : vector<8x25xf32>
    %cst_75 = arith.constant 1.42141378 : f32
    %256 = vector.broadcast %cst_75 : f32 to vector<8x25xf32>
    %257 = arith.addf %256, %255 : vector<8x25xf32>
    %258 = arith.mulf %250, %257 : vector<8x25xf32>
    %cst_76 = arith.constant -0.284496725 : f32
    %259 = vector.broadcast %cst_76 : f32 to vector<8x25xf32>
    %260 = arith.addf %259, %258 : vector<8x25xf32>
    %261 = arith.mulf %250, %260 : vector<8x25xf32>
    %cst_77 = arith.constant 0.254829586 : f32
    %262 = vector.broadcast %cst_77 : f32 to vector<8x25xf32>
    %263 = arith.addf %262, %261 : vector<8x25xf32>
    %264 = arith.mulf %250, %263 : vector<8x25xf32>
    %cst_78 = arith.constant 0.000000e+00 : f32
    %265 = vector.broadcast %cst_78 : f32 to vector<8x25xf32>
    %266 = arith.subf %265, %244 : vector<8x25xf32>
    %267 = arith.mulf %266, %244 : vector<8x25xf32>
    %268 = math.exp %267 : vector<8x25xf32>
    %269 = arith.mulf %264, %268 : vector<8x25xf32>
    %cst_79 = arith.constant 1.000000e+00 : f32
    %270 = vector.broadcast %cst_79 : f32 to vector<8x25xf32>
    %271 = arith.subf %270, %269 : vector<8x25xf32>
    %cst_80 = arith.constant 0.000000e+00 : f32
    %272 = vector.broadcast %cst_80 : f32 to vector<8x25xf32>
    %273 = arith.cmpf oge, %243, %272 : vector<8x25xf32>
    %cst_81 = arith.constant 0.000000e+00 : f32
    %274 = vector.broadcast %cst_81 : f32 to vector<8x25xf32>
    %275 = arith.subf %274, %271 : vector<8x25xf32>
    %276 = arith.select %273, %271, %275 : vector<8x25xi1>, vector<8x25xf32>
    %cst_82 = arith.constant 5.000000e-01 : f32
    %277 = vector.broadcast %cst_82 : f32 to vector<8x25xf32>
    %278 = arith.mulf %277, %241 : vector<8x25xf32>
    %cst_83 = arith.constant 1.000000e+00 : f32
    %279 = vector.broadcast %cst_83 : f32 to vector<8x25xf32>
    %280 = arith.addf %279, %276 : vector<8x25xf32>
    %281 = arith.mulf %278, %280 : vector<8x25xf32>
    %c6 = arith.constant 6 : index
    %282 = memref.load %arg3[%c6] : memref<27xf32, #tpu.memory_space<smem>>
    %283 = vector.broadcast %282 : f32 to vector<8x25xf32>
    %284 = arith.mulf %283, %221 : vector<8x25xf32>
    %c7 = arith.constant 7 : index
    %285 = memref.load %arg3[%c7] : memref<27xf32, #tpu.memory_space<smem>>
    %286 = vector.broadcast %285 : f32 to vector<8x25xf32>
    %287 = arith.mulf %286, %223 : vector<8x25xf32>
    %c8 = arith.constant 8 : index
    %288 = memref.load %arg3[%c8] : memref<27xf32, #tpu.memory_space<smem>>
    %289 = vector.broadcast %288 : f32 to vector<8x25xf32>
    %290 = arith.mulf %289, %225 : vector<8x25xf32>
    %c13 = arith.constant 13 : index
    %291 = memref.load %arg3[%c13] : memref<27xf32, #tpu.memory_space<smem>>
    %cst_84 = arith.constant 0.000000e+00 : f32
    %292 = vector.broadcast %cst_84 : f32 to vector<8x25xf32>
    %293 = arith.addf %292, %284 : vector<8x25xf32>
    %294 = arith.addf %293, %287 : vector<8x25xf32>
    %295 = arith.addf %294, %290 : vector<8x25xf32>
    %296 = vector.broadcast %291 : f32 to vector<8x25xf32>
    %297 = arith.addf %296, %295 : vector<8x25xf32>
    %cst_85 = arith.constant 0.707106769 : f32
    %298 = vector.broadcast %cst_85 : f32 to vector<8x25xf32>
    %299 = arith.mulf %297, %298 : vector<8x25xf32>
    %300 = math.absf %299 : vector<8x25xf32>
    %cst_86 = arith.constant 0.327591091 : f32
    %301 = vector.broadcast %cst_86 : f32 to vector<8x25xf32>
    %302 = arith.mulf %301, %300 : vector<8x25xf32>
    %cst_87 = arith.constant 1.000000e+00 : f32
    %303 = vector.broadcast %cst_87 : f32 to vector<8x25xf32>
    %304 = arith.addf %303, %302 : vector<8x25xf32>
    %cst_88 = arith.constant 1.000000e+00 : f32
    %305 = vector.broadcast %cst_88 : f32 to vector<8x25xf32>
    %306 = arith.divf %305, %304 : vector<8x25xf32>
    %cst_89 = arith.constant 1.06140542 : f32
    %307 = vector.broadcast %cst_89 : f32 to vector<8x25xf32>
    %308 = arith.mulf %306, %307 : vector<8x25xf32>
    %cst_90 = arith.constant -1.45315206 : f32
    %309 = vector.broadcast %cst_90 : f32 to vector<8x25xf32>
    %310 = arith.addf %309, %308 : vector<8x25xf32>
    %311 = arith.mulf %306, %310 : vector<8x25xf32>
    %cst_91 = arith.constant 1.42141378 : f32
    %312 = vector.broadcast %cst_91 : f32 to vector<8x25xf32>
    %313 = arith.addf %312, %311 : vector<8x25xf32>
    %314 = arith.mulf %306, %313 : vector<8x25xf32>
    %cst_92 = arith.constant -0.284496725 : f32
    %315 = vector.broadcast %cst_92 : f32 to vector<8x25xf32>
    %316 = arith.addf %315, %314 : vector<8x25xf32>
    %317 = arith.mulf %306, %316 : vector<8x25xf32>
    %cst_93 = arith.constant 0.254829586 : f32
    %318 = vector.broadcast %cst_93 : f32 to vector<8x25xf32>
    %319 = arith.addf %318, %317 : vector<8x25xf32>
    %320 = arith.mulf %306, %319 : vector<8x25xf32>
    %cst_94 = arith.constant 0.000000e+00 : f32
    %321 = vector.broadcast %cst_94 : f32 to vector<8x25xf32>
    %322 = arith.subf %321, %300 : vector<8x25xf32>
    %323 = arith.mulf %322, %300 : vector<8x25xf32>
    %324 = math.exp %323 : vector<8x25xf32>
    %325 = arith.mulf %320, %324 : vector<8x25xf32>
    %cst_95 = arith.constant 1.000000e+00 : f32
    %326 = vector.broadcast %cst_95 : f32 to vector<8x25xf32>
    %327 = arith.subf %326, %325 : vector<8x25xf32>
    %cst_96 = arith.constant 0.000000e+00 : f32
    %328 = vector.broadcast %cst_96 : f32 to vector<8x25xf32>
    %329 = arith.cmpf oge, %299, %328 : vector<8x25xf32>
    %cst_97 = arith.constant 0.000000e+00 : f32
    %330 = vector.broadcast %cst_97 : f32 to vector<8x25xf32>
    %331 = arith.subf %330, %327 : vector<8x25xf32>
    %332 = arith.select %329, %327, %331 : vector<8x25xi1>, vector<8x25xf32>
    %cst_98 = arith.constant 5.000000e-01 : f32
    %333 = vector.broadcast %cst_98 : f32 to vector<8x25xf32>
    %334 = arith.mulf %333, %297 : vector<8x25xf32>
    %cst_99 = arith.constant 1.000000e+00 : f32
    %335 = vector.broadcast %cst_99 : f32 to vector<8x25xf32>
    %336 = arith.addf %335, %332 : vector<8x25xf32>
    %337 = arith.mulf %334, %336 : vector<8x25xf32>
    %c9 = arith.constant 9 : index
    %338 = memref.load %arg3[%c9] : memref<27xf32, #tpu.memory_space<smem>>
    %339 = vector.broadcast %338 : f32 to vector<8x25xf32>
    %340 = arith.mulf %339, %221 : vector<8x25xf32>
    %c10 = arith.constant 10 : index
    %341 = memref.load %arg3[%c10] : memref<27xf32, #tpu.memory_space<smem>>
    %342 = vector.broadcast %341 : f32 to vector<8x25xf32>
    %343 = arith.mulf %342, %223 : vector<8x25xf32>
    %c11 = arith.constant 11 : index
    %344 = memref.load %arg3[%c11] : memref<27xf32, #tpu.memory_space<smem>>
    %345 = vector.broadcast %344 : f32 to vector<8x25xf32>
    %346 = arith.mulf %345, %225 : vector<8x25xf32>
    %c14 = arith.constant 14 : index
    %347 = memref.load %arg3[%c14] : memref<27xf32, #tpu.memory_space<smem>>
    %cst_100 = arith.constant 0.000000e+00 : f32
    %348 = vector.broadcast %cst_100 : f32 to vector<8x25xf32>
    %349 = arith.addf %348, %340 : vector<8x25xf32>
    %350 = arith.addf %349, %343 : vector<8x25xf32>
    %351 = arith.addf %350, %346 : vector<8x25xf32>
    %352 = vector.broadcast %347 : f32 to vector<8x25xf32>
    %353 = arith.addf %352, %351 : vector<8x25xf32>
    %cst_101 = arith.constant 0.707106769 : f32
    %354 = vector.broadcast %cst_101 : f32 to vector<8x25xf32>
    %355 = arith.mulf %353, %354 : vector<8x25xf32>
    %356 = math.absf %355 : vector<8x25xf32>
    %cst_102 = arith.constant 0.327591091 : f32
    %357 = vector.broadcast %cst_102 : f32 to vector<8x25xf32>
    %358 = arith.mulf %357, %356 : vector<8x25xf32>
    %cst_103 = arith.constant 1.000000e+00 : f32
    %359 = vector.broadcast %cst_103 : f32 to vector<8x25xf32>
    %360 = arith.addf %359, %358 : vector<8x25xf32>
    %cst_104 = arith.constant 1.000000e+00 : f32
    %361 = vector.broadcast %cst_104 : f32 to vector<8x25xf32>
    %362 = arith.divf %361, %360 : vector<8x25xf32>
    %cst_105 = arith.constant 1.06140542 : f32
    %363 = vector.broadcast %cst_105 : f32 to vector<8x25xf32>
    %364 = arith.mulf %362, %363 : vector<8x25xf32>
    %cst_106 = arith.constant -1.45315206 : f32
    %365 = vector.broadcast %cst_106 : f32 to vector<8x25xf32>
    %366 = arith.addf %365, %364 : vector<8x25xf32>
    %367 = arith.mulf %362, %366 : vector<8x25xf32>
    %cst_107 = arith.constant 1.42141378 : f32
    %368 = vector.broadcast %cst_107 : f32 to vector<8x25xf32>
    %369 = arith.addf %368, %367 : vector<8x25xf32>
    %370 = arith.mulf %362, %369 : vector<8x25xf32>
    %cst_108 = arith.constant -0.284496725 : f32
    %371 = vector.broadcast %cst_108 : f32 to vector<8x25xf32>
    %372 = arith.addf %371, %370 : vector<8x25xf32>
    %373 = arith.mulf %362, %372 : vector<8x25xf32>
    %cst_109 = arith.constant 0.254829586 : f32
    %374 = vector.broadcast %cst_109 : f32 to vector<8x25xf32>
    %375 = arith.addf %374, %373 : vector<8x25xf32>
    %376 = arith.mulf %362, %375 : vector<8x25xf32>
    %cst_110 = arith.constant 0.000000e+00 : f32
    %377 = vector.broadcast %cst_110 : f32 to vector<8x25xf32>
    %378 = arith.subf %377, %356 : vector<8x25xf32>
    %379 = arith.mulf %378, %356 : vector<8x25xf32>
    %380 = math.exp %379 : vector<8x25xf32>
    %381 = arith.mulf %376, %380 : vector<8x25xf32>
    %cst_111 = arith.constant 1.000000e+00 : f32
    %382 = vector.broadcast %cst_111 : f32 to vector<8x25xf32>
    %383 = arith.subf %382, %381 : vector<8x25xf32>
    %cst_112 = arith.constant 0.000000e+00 : f32
    %384 = vector.broadcast %cst_112 : f32 to vector<8x25xf32>
    %385 = arith.cmpf oge, %355, %384 : vector<8x25xf32>
    %cst_113 = arith.constant 0.000000e+00 : f32
    %386 = vector.broadcast %cst_113 : f32 to vector<8x25xf32>
    %387 = arith.subf %386, %383 : vector<8x25xf32>
    %388 = arith.select %385, %383, %387 : vector<8x25xi1>, vector<8x25xf32>
    %cst_114 = arith.constant 5.000000e-01 : f32
    %389 = vector.broadcast %cst_114 : f32 to vector<8x25xf32>
    %390 = arith.mulf %389, %353 : vector<8x25xf32>
    %cst_115 = arith.constant 1.000000e+00 : f32
    %391 = vector.broadcast %cst_115 : f32 to vector<8x25xf32>
    %392 = arith.addf %391, %388 : vector<8x25xf32>
    %393 = arith.mulf %390, %392 : vector<8x25xf32>
    %c15 = arith.constant 15 : index
    %394 = memref.load %arg3[%c15] : memref<27xf32, #tpu.memory_space<smem>>
    %395 = vector.broadcast %394 : f32 to vector<8x25xf32>
    %396 = arith.mulf %395, %281 : vector<8x25xf32>
    %c16 = arith.constant 16 : index
    %397 = memref.load %arg3[%c16] : memref<27xf32, #tpu.memory_space<smem>>
    %398 = vector.broadcast %397 : f32 to vector<8x25xf32>
    %399 = arith.mulf %398, %337 : vector<8x25xf32>
    %c17 = arith.constant 17 : index
    %400 = memref.load %arg3[%c17] : memref<27xf32, #tpu.memory_space<smem>>
    %401 = vector.broadcast %400 : f32 to vector<8x25xf32>
    %402 = arith.mulf %401, %393 : vector<8x25xf32>
    %c24 = arith.constant 24 : index
    %403 = memref.load %arg3[%c24] : memref<27xf32, #tpu.memory_space<smem>>
    %cst_116 = arith.constant 0.000000e+00 : f32
    %404 = vector.broadcast %cst_116 : f32 to vector<8x25xf32>
    %405 = arith.addf %404, %396 : vector<8x25xf32>
    %406 = arith.addf %405, %399 : vector<8x25xf32>
    %407 = arith.addf %406, %402 : vector<8x25xf32>
    %408 = vector.broadcast %403 : f32 to vector<8x25xf32>
    %409 = arith.addf %408, %407 : vector<8x25xf32>
    %410 = vector.extract_strided_slice %193 {offsets = [0, 0, 0], sizes = [1, 8, 25], strides = [1, 1, 1]} : vector<3x8x25xf32> to vector<1x8x25xf32>
    %411 = vector.shape_cast %410 : vector<1x8x25xf32> to vector<8x25xf32>
    %412 = arith.addf %411, %409 : vector<8x25xf32>
    %c0_117 = arith.constant 0 : index
    %c0_118 = arith.constant 0 : index
    %c0_119 = arith.constant 0 : index
    %413 = vector.load %arg4[%c0_117, %c0_118, %c0_119] : memref<3x8x25xf32, #tpu.memory_space<vmem>>, vector<1x8x25xf32>
    %414 = vector.shape_cast %413 : vector<1x8x25xf32> to vector<8x25xf32>
    %415 = vector.shape_cast %412 : vector<8x25xf32> to vector<1x8x25xf32>
    tpu.vector_store %arg4[%c0_117, %c0_118, %c0_119], %415 {strides = array<i32>} : memref<3x8x25xf32, #tpu.memory_space<vmem>>, vector<1x8x25xf32>,
    %c18 = arith.constant 18 : index
    %416 = memref.load %arg3[%c18] : memref<27xf32, #tpu.memory_space<smem>>
    %417 = vector.broadcast %416 : f32 to vector<8x25xf32>
    %418 = arith.mulf %417, %281 : vector<8x25xf32>
    %c19 = arith.constant 19 : index
    %419 = memref.load %arg3[%c19] : memref<27xf32, #tpu.memory_space<smem>>
    %420 = vector.broadcast %419 : f32 to vector<8x25xf32>
    %421 = arith.mulf %420, %337 : vector<8x25xf32>
    %c20 = arith.constant 20 : index
    %422 = memref.load %arg3[%c20] : memref<27xf32, #tpu.memory_space<smem>>
    %423 = vector.broadcast %422 : f32 to vector<8x25xf32>
    %424 = arith.mulf %423, %393 : vector<8x25xf32>
    %c25 = arith.constant 25 : index
    %425 = memref.load %arg3[%c25] : memref<27xf32, #tpu.memory_space<smem>>
    %cst_120 = arith.constant 0.000000e+00 : f32
    %426 = vector.broadcast %cst_120 : f32 to vector<8x25xf32>
    %427 = arith.addf %426, %418 : vector<8x25xf32>
    %428 = arith.addf %427, %421 : vector<8x25xf32>
    %429 = arith.addf %428, %424 : vector<8x25xf32>
    %430 = vector.broadcast %425 : f32 to vector<8x25xf32>
    %431 = arith.addf %430, %429 : vector<8x25xf32>
    %432 = vector.extract_strided_slice %193 {offsets = [1, 0, 0], sizes = [1, 8, 25], strides = [1, 1, 1]} : vector<3x8x25xf32> to vector<1x8x25xf32>
    %433 = vector.shape_cast %432 : vector<1x8x25xf32> to vector<8x25xf32>
    %434 = arith.addf %433, %431 : vector<8x25xf32>
    %c1_121 = arith.constant 1 : index
    %c0_122 = arith.constant 0 : index
    %c0_123 = arith.constant 0 : index
    %435 = vector.load %arg4[%c1_121, %c0_122, %c0_123] : memref<3x8x25xf32, #tpu.memory_space<vmem>>, vector<1x8x25xf32>
    %436 = vector.shape_cast %435 : vector<1x8x25xf32> to vector<8x25xf32>
    %437 = vector.shape_cast %434 : vector<8x25xf32> to vector<1x8x25xf32>
    tpu.vector_store %arg4[%c1_121, %c0_122, %c0_123], %437 {strides = array<i32>} : memref<3x8x25xf32, #tpu.memory_space<vmem>>, vector<1x8x25xf32>,
    %c21 = arith.constant 21 : index
    %438 = memref.load %arg3[%c21] : memref<27xf32, #tpu.memory_space<smem>>
    %439 = vector.broadcast %438 : f32 to vector<8x25xf32>
    %440 = arith.mulf %439, %281 : vector<8x25xf32>
    %c22 = arith.constant 22 : index
    %441 = memref.load %arg3[%c22] : memref<27xf32, #tpu.memory_space<smem>>
    %442 = vector.broadcast %441 : f32 to vector<8x25xf32>
    %443 = arith.mulf %442, %337 : vector<8x25xf32>
    %c23 = arith.constant 23 : index
    %444 = memref.load %arg3[%c23] : memref<27xf32, #tpu.memory_space<smem>>
    %445 = vector.broadcast %444 : f32 to vector<8x25xf32>
    %446 = arith.mulf %445, %393 : vector<8x25xf32>
    %c26 = arith.constant 26 : index
    %447 = memref.load %arg3[%c26] : memref<27xf32, #tpu.memory_space<smem>>
    %cst_124 = arith.constant 0.000000e+00 : f32
    %448 = vector.broadcast %cst_124 : f32 to vector<8x25xf32>
    %449 = arith.addf %448, %440 : vector<8x25xf32>
    %450 = arith.addf %449, %443 : vector<8x25xf32>
    %451 = arith.addf %450, %446 : vector<8x25xf32>
    %452 = vector.broadcast %447 : f32 to vector<8x25xf32>
    %453 = arith.addf %452, %451 : vector<8x25xf32>
    %454 = vector.extract_strided_slice %193 {offsets = [2, 0, 0], sizes = [1, 8, 25], strides = [1, 1, 1]} : vector<3x8x25xf32> to vector<1x8x25xf32>
    %455 = vector.shape_cast %454 : vector<1x8x25xf32> to vector<8x25xf32>
    %456 = arith.addf %455, %453 : vector<8x25xf32>
    %c2_125 = arith.constant 2 : index
    %c0_126 = arith.constant 0 : index
    %c0_127 = arith.constant 0 : index
    %457 = vector.load %arg4[%c2_125, %c0_126, %c0_127] : memref<3x8x25xf32, #tpu.memory_space<vmem>>, vector<1x8x25xf32>
    %458 = vector.shape_cast %457 : vector<1x8x25xf32> to vector<8x25xf32>
    %459 = vector.shape_cast %456 : vector<8x25xf32> to vector<1x8x25xf32>
    tpu.vector_store %arg4[%c2_125, %c0_126, %c0_127], %459 {strides = array<i32>} : memref<3x8x25xf32, #tpu.memory_space<vmem>>, vector<1x8x25xf32>,
    return
  }
  func.func @transform_0(%arg0: i32) -> (i32, i32, i32) {
    %c0_i32 = arith.constant 0 : i32
    %c0_i32_0 = arith.constant 0 : i32
    %c0_i32_1 = arith.constant 0 : i32
    %c0_i32_2 = arith.constant 0 : i32
    return %c0_i32, %c0_i32_0, %c0_i32_1 : i32, i32, i32
  }
  func.func @transform_1(%arg0: i32) -> (i32, i32, i32) {
    %c0_i32 = arith.constant 0 : i32
    %c0_i32_0 = arith.constant 0 : i32
    %c0_i32_1 = arith.constant 0 : i32
    %c0_i32_2 = arith.constant 0 : i32
    return %c0_i32, %c0_i32_0, %c0_i32_1 : i32, i32, i32
  }
  func.func @transform_2(%arg0: i32) -> i32 {
    %c0_i32 = arith.constant 0 : i32
    %c0_i32_0 = arith.constant 0 : i32
    return %c0_i32 : i32
  }
  func.func @transform_3(%arg0: i32) -> (i32, i32, i32) {
    %c0_i32 = arith.constant 0 : i32
    %c0_i32_0 = arith.constant 0 : i32
    %c0_i32_1 = arith.constant 0 : i32
    %c0_i32_2 = arith.constant 0 : i32
    return %c0_i32, %c0_i32_0, %c0_i32_1 : i32, i32, i32
  }
}

</mosaic_0001>

<llo_original>
// kernel: tpu_custom_call.1
$region0: #{tpu_custom_call.1}
  #allocation0 [shape = 'u32[]', space=smem, size = 0x4, offset = 0x4, fixed_abs, tag = 'smem constant byte address 0x4 - core index']
  #allocation1 [shape = 'u32[72,128]{1,0:T(1,128)}', space=vmem, size = 0x9000, scoped, tag = 'internal scratch']
  %s0 = inlined_call_operand.hbm [shape: f32[3,8,25], index: 0, kind: input, shape index: {}]
  %s1 = inlined_call_operand.hbm [shape: f32[13,1,25], index: 1, kind: input, shape index: {}]
  %s2 = inlined_call_operand.vmem [shape: f32[27], index: 2, kind: input, shape index: {}]
  %s3 = inlined_call_operand.hbm [shape: f32[3,8,25], index: 3, kind: output, shape index: {}]
  %s4 = sld [smem:[#allocation0]]
  $region34: #{tpu_custom_call.1} parent=0
    _
  %s6 = ssub.s32 1, %s4
  %s7 = scalar_select 0, %s6, %s4
  $region1: #{tpu_custom_call.1} parent=0
    #allocation2 [shape = 'u8[12288]{0}', space=vmem, size = 0x3000, scoped, tag = 'input window, operand 0, single buffered']
    #allocation3 [shape = 's32[1]{0}', space=sflag, size = 0x4, scoped, tag = 'scoped memory for tpu_custom_call.1']
    #allocation4 [shape = 's32[1]{0}', space=sflag, size = 0x4, scoped, tag = 'scoped memory for tpu_custom_call.1']
    #allocation5 [shape = 's32[1]{0}', space=sflag, size = 0x4, scoped, tag = 'scoped memory for tpu_custom_call.1']
    #allocation6 [shape = 'u8[6656]{0}', space=vmem, size = 0x1c00, scoped, tag = 'input window, operand 1, single buffered']
    #allocation7 [shape = 's32[1]{0}', space=sflag, size = 0x4, scoped, tag = 'scoped memory for tpu_custom_call.1']
    #allocation8 [shape = 'u8[512]{0}', space=smem, size = 0x200, scoped, tag = 'input window, operand 2, single buffered']
    #allocation9 [shape = 'u8[12288]{0}', space=vmem, size = 0x3000, scoped, tag = 'output window, operand 0, single buffered']
    %8 = vsyncpa [#allocation3], 0
    %9 = vsyncpa [#allocation7], 0
    %10 = vsyncpa [#allocation5], 0
    %11 = vsyncpa [#allocation4], 0
    // Predicated region
    $region2: #{tpu_custom_call.1} parent=1 // pred_check
      _
    $region3: #{tpu_custom_call.1} parent=1 // pred_check_branch
      %13 = sbr.rel (0) target = $region5
    $region4: #{tpu_custom_call.1} parent=1 // pred_region
      %15 = vsyncadd [#allocation3], 0
      %s16 = sshll.u32 %s0, 4
      %s17 = int_to_ptr.hbm [resolvable:$true] %s16
      %s18 = sshll.u32 [#allocation2], 4
      %s19 = int_to_ptr.vmem [resolvable:$true] %s18
      %24 = dma.hbm_to_vmem [thread:$0]  %s17, 384, %s19, [#allocation3], 128, 128, 8
    $region5: #{tpu_custom_call.1} parent=1 // pred_fallthru
      _
    // Predicated region
    $region6: #{tpu_custom_call.1} parent=1 // pred_check
      _
    $region7: #{tpu_custom_call.1} parent=1 // pred_check_branch
      %26 = sbr.rel (0) target = $region9
    $region8: #{tpu_custom_call.1} parent=1 // pred_region
      %28 = vsyncadd [#allocation7], 0
      %s29 = sshll.u32 %s1, 4
      %s30 = int_to_ptr.hbm [resolvable:$true] %s29
      %s31 = sshll.u32 [#allocation6], 4
      %s32 = int_to_ptr.vmem [resolvable:$true] %s31
      %37 = dma.hbm_to_vmem [thread:$0]  %s30, 208, %s32, [#allocation7], 16, 16, 1
    $region9: #{tpu_custom_call.1} parent=1 // pred_fallthru
      _
    // Predicated region
    $region10: #{tpu_custom_call.1} parent=1 // pred_check
      _
    $region11: #{tpu_custom_call.1} parent=1 // pred_check_branch
      %39 = sbr.rel (0) target = $region13
    $region12: #{tpu_custom_call.1} parent=1 // pred_region
      %41 = vsyncadd [#allocation5], 0
      %s43 = sshll.u32 %s2, 4
      %s44 = int_to_ptr.vmem [resolvable:$true] %s43
      %46 = dma.vmem_to_smem %s44, 16, [#allocation8], [#allocation5]
    $region13: #{tpu_custom_call.1} parent=1 // pred_fallthru
      _
    // Predicated region
    $region14: #{tpu_custom_call.1} parent=1 // pred_check
      _
    $region15: #{tpu_custom_call.1} parent=1 // pred_check_branch
      %48 = sbr.rel (0) target = $region17
    $region16: #{tpu_custom_call.1} parent=1 // pred_region
      %50 = dma.done [#allocation3], 384
    $region17: #{tpu_custom_call.1} parent=1 // pred_fallthru
      _
    // Predicated region
    $region18: #{tpu_custom_call.1} parent=1 // pred_check
      _
    $region19: #{tpu_custom_call.1} parent=1 // pred_check_branch
      %52 = sbr.rel (0) target = $region21
    $region20: #{tpu_custom_call.1} parent=1 // pred_region
      %54 = dma.done [#allocation7], 208
    $region21: #{tpu_custom_call.1} parent=1 // pred_fallthru
      _
    // Predicated region
    $region22: #{tpu_custom_call.1} parent=1 // pred_check
      _
    $region23: #{tpu_custom_call.1} parent=1 // pred_check_branch
      %56 = sbr.rel (0) target = $region25
    $region24: #{tpu_custom_call.1} parent=1 // pred_region
      %58 = dma.done [#allocation5], 16
    $region25: #{tpu_custom_call.1} parent=1 // pred_fallthru
      _
    %59 = sfence
    %v60 = vld [vmem:[#allocation2] sm:$0xff]
    %v61 = vld [vmem:[#allocation2 + $0x8] sm:$0xff]
    %v62 = vld [vmem:[#allocation2 + $0x10] sm:$0xff]
    %v63 = vld [vmem:[#allocation6] sm:$0x1]
    %v64 = vld [vmem:[#allocation6 + $0x1] sm:$0x1]
    %v65 = vld [vmem:[#allocation6 + $0x2] sm:$0x1]
    %v66 = vld [vmem:[#allocation6 + $0x3] sm:$0x1]
    %v67 = vld [vmem:[#allocation6 + $0x4] sm:$0x1]
    %v68 = vld [vmem:[#allocation6 + $0x5] sm:$0x1]
    %v69 = vld [vmem:[#allocation6 + $0x6] sm:$0x1]
    %v70 = vld [vmem:[#allocation6 + $0x7] sm:$0x1]
    %v71 = vld [vmem:[#allocation6 + $0x8] sm:$0x1]
    %v72 = vld [vmem:[#allocation6 + $0x9] sm:$0x1]
    %v73 = vld [vmem:[#allocation6 + $0xa] sm:$0x1]
    %v74 = vld [vmem:[#allocation6 + $0xb] sm:$0x1]
    %v75 = vld [vmem:[#allocation6 + $0xc] sm:$0x1]
    %vm76 = vcmask 203776
    %v77 = vsel %vm76, %v60, 0.0
    %78 = vadd.xlane.f32.xlu0 %v77
    %v79 = vpop.xlane.xlu0 %78
    %v80 = vsel %vm76, %v61, 0.0
    %81 = vadd.xlane.f32.xlu0 %v80
    %v82 = vpop.xlane.xlu0 %81
    %v83 = vsel %vm76, %v62, 0.0
    %84 = vadd.xlane.f32.xlu0 %v83
    %v85 = vpop.xlane.xlu0 %84
    %v86 = vmul.f32 %v60, %v60
    %v87 = vmul.f32 %v61, %v61
    %v88 = vmul.f32 %v62, %v62
    %v89 = vsel %vm76, %v86, 0.0
    %90 = vadd.xlane.f32.xlu0 %v89
    %v91 = vpop.xlane.xlu0 %90
    %v92 = vsel %vm76, %v87, 0.0
    %93 = vadd.xlane.f32.xlu0 %v92
    %v94 = vpop.xlane.xlu0 %93
    %v95 = vsel %vm76, %v88, 0.0
    %96 = vadd.xlane.f32.xlu0 %v95
    %v97 = vpop.xlane.xlu0 %96
    %v98 = vadd.f32 %v79, %v82
    %v99 = vadd.f32 %v98, %v85
    %v100 = vadd.f32 %v91, %v94
    %v101 = vadd.f32 %v100, %v97
    %v102 = vmul.f32 %v99, 0.013333334
    %v103 = vmul.f32 %v101, 0.013333334
    %v104 = vmul.f32 %v102, %v102
    %v105 = vsub.f32 %v103, %v104
    %v106 = vsub.f32 %v60, %v102
    %v107 = vsub.f32 %v61, %v102
    %v108 = vsub.f32 %v62, %v102
    %v109 = vadd.f32 %v105, 1e-05
    %v110 = vrsqrt.pop %v109
    %v111 = vmul.f32 %v110, %v109
    %v112 = vmul.f32 %v111, %v110
    %v113 = vmul.f32 0.5, %v112
    %v114 = vsub.f32 1.5, %v113
    %v115 = vmul.f32 %v110, %v114
    %vm116 = vweird.f32 %v109
    %vm117 = vweird.f32 %v110
    %vm118 = vmor %vm116, %vm117
    %v119 = vsel %vm118, %v110, %v115
    %v120 = vmul.f32 %v106, %v119
    %v121 = vmul.f32 %v107, %v119
    %v122 = vmul.f32 %v108, %v119
    %v126 = vperm.slane %v63, 0
    %v127 = vperm.slane %v64, 0
    %v128 = vperm.slane %v65, 0
    %v132 = vmul.f32 %v120, %v126
    %v133 = vmul.f32 %v121, %v127
    %v134 = vmul.f32 %v122, %v128
    %v138 = vperm.slane %v66, 0
    %v139 = vperm.slane %v67, 0
    %v140 = vperm.slane %v68, 0
    %v144 = vadd.f32 %v132, %v138
    %v145 = vadd.f32 %v133, %v139
    %v146 = vadd.f32 %v134, %v140
    %v148 = vperm.slane %v69, 0
    %v150 = vmul.f32 %v144, %v148
    %v151 = vmul.f32 %v145, %v148
    %v152 = vmul.f32 %v146, %v148
    %v153 = vsel %vm76, %v150, 0.0
    %154 = vadd.xlane.f32.xlu0 %v153
    %v155 = vpop.xlane.xlu0 %154
    %v156 = vsel %vm76, %v151, 0.0
    %157 = vadd.xlane.f32.xlu0 %v156
    %v158 = vpop.xlane.xlu0 %157
    %v159 = vsel %vm76, %v152, 0.0
    %160 = vadd.xlane.f32.xlu0 %v159
    %v161 = vpop.xlane.xlu0 %160
    %s162 = sld [smem:[#allocation8]]
    %v163 = vstv %s162
    %v164 = vadd.f32 %v155, %v163
    %v165 = vadd.f32 %v158, %v163
    %v166 = vadd.f32 %v161, %v163
    %v167 = vmul.f32 %v164, 0.70710677
    %v168 = vmul.f32 %v165, 0.70710677
    %v169 = vmul.f32 %v166, 0.70710677
    %v170 = vand.u32 2147483647, %v167
    %v171 = vand.u32 2147483647, %v168
    %v172 = vand.u32 2147483647, %v169
    %v173 = vmul.f32 %v170, 0.3275911
    %v174 = vmul.f32 %v171, 0.3275911
    %v175 = vmul.f32 %v172, 0.3275911
    %v176 = vadd.f32 %v173, 1.0
    %v177 = vadd.f32 %v174, 1.0
    %v178 = vadd.f32 %v175, 1.0
    %v179 = vrcp.pop %v176
    %v180 = vmul.f32 %v176, %v179
    %v181 = vsub.f32 1.0, %v180
    %v182 = vmul.f32 %v179, %v181
    %v183 = vadd.f32 %v179, %v182
    %vm184 = vweird.f32 %v176
    %vm185 = vweird.f32 %v179
    %vm186 = vmor %vm184, %vm185
    %v187 = vsel %vm186, %v179, %v183
    %v188 = vand.u32 2147483647, %v176
    %vm189 = vcmp.eq.f32.partialorder %v188, 8.507059e+37
    %v190 = vand.u32 %v176, 2147483648
    %v191 = vor.u32 1.1754944e-38, %v190
    %v192 = vsel %vm189, %v191, %v187
    %v193 = vmul.f32 1.0, %v192
    %v194 = vrcp.pop %v177
    %v195 = vmul.f32 %v177, %v194
    %v196 = vsub.f32 1.0, %v195
    %v197 = vmul.f32 %v194, %v196
    %v198 = vadd.f32 %v194, %v197
    %vm199 = vweird.f32 %v177
    %vm200 = vweird.f32 %v194
    %vm201 = vmor %vm199, %vm200
    %v202 = vsel %vm201, %v194, %v198
    %v203 = vand.u32 2147483647, %v177
    %vm204 = vcmp.eq.f32.partialorder %v203, 8.507059e+37
    %v205 = vand.u32 %v177, 2147483648
    %v206 = vor.u32 1.1754944e-38, %v205
    %v207 = vsel %vm204, %v206, %v202
    %v208 = vmul.f32 1.0, %v207
    %v209 = vrcp.pop %v178
    %v210 = vmul.f32 %v178, %v209
    %v211 = vsub.f32 1.0, %v210
    %v212 = vmul.f32 %v209, %v211
    %v213 = vadd.f32 %v209, %v212
    %vm214 = vweird.f32 %v178
    %vm215 = vweird.f32 %v209
    %vm216 = vmor %vm214, %vm215
    %v217 = vsel %vm216, %v209, %v213
    %v218 = vand.u32 2147483647, %v178
    %vm219 = vcmp.eq.f32.partialorder %v218, 8.507059e+37
    %v220 = vand.u32 %v178, 2147483648
    %v221 = vor.u32 1.1754944e-38, %v220
    %v222 = vsel %vm219, %v221, %v217
    %v223 = vmul.f32 1.0, %v222
    %v224 = vmul.f32 %v193, 1.0614054
    %v225 = vmul.f32 %v208, 1.0614054
    %v226 = vmul.f32 %v223, 1.0614054
    %v227 = vadd.f32 %v224, -1.4531521
    %v228 = vadd.f32 %v225, -1.4531521
    %v229 = vadd.f32 %v226, -1.4531521
    %v230 = vmul.f32 %v193, %v227
    %v231 = vmul.f32 %v208, %v228
    %v232 = vmul.f32 %v223, %v229
    %v233 = vadd.f32 %v230, 1.4214138
    %v234 = vadd.f32 %v231, 1.4214138
    %v235 = vadd.f32 %v232, 1.4214138
    %v236 = vmul.f32 %v193, %v233
    %v237 = vmul.f32 %v208, %v234
    %v238 = vmul.f32 %v223, %v235
    %v239 = vadd.f32 %v236, -0.28449672
    %v240 = vadd.f32 %v237, -0.28449672
    %v241 = vadd.f32 %v238, -0.28449672
    %v242 = vmul.f32 %v193, %v239
    %v243 = vmul.f32 %v208, %v240
    %v244 = vmul.f32 %v223, %v241
    %v245 = vadd.f32 %v242, 0.2548296
    %v246 = vadd.f32 %v243, 0.2548296
    %v247 = vadd.f32 %v244, 0.2548296
    %v248 = vmul.f32 %v193, %v245
    %v249 = vmul.f32 %v208, %v246
    %v250 = vmul.f32 %v223, %v247
    %v251 = vsub.f32 0.0, %v170
    %v252 = vsub.f32 0.0, %v171
    %v253 = vsub.f32 0.0, %v172
    %v254 = vmul.f32 %v251, %v170
    %v255 = vmul.f32 %v252, %v171
    %v256 = vmul.f32 %v253, %v172
    %v257 = vmul.f32 %v254, 1.442695
    %v258 = vpow.pop %v257
    %v259 = vmul.f32 %v255, 1.442695
    %v260 = vpow.pop %v259
    %v261 = vmul.f32 %v256, 1.442695
    %v262 = vpow.pop %v261
    %v263 = vmul.f32 %v248, %v258
    %v264 = vmul.f32 %v249, %v260
    %v265 = vmul.f32 %v250, %v262
    %v266 = vsub.f32 1.0, %v263
    %v267 = vsub.f32 1.0, %v264
    %v268 = vsub.f32 1.0, %v265
    %vm269 = vcmp.ge.f32.partialorder %v167, 0.0
    %vm270 = vcmp.ge.f32.partialorder %v168, 0.0
    %vm271 = vcmp.ge.f32.partialorder %v169, 0.0
    %v272 = vsub.f32 0.0, %v266
    %v273 = vsub.f32 0.0, %v267
    %v274 = vsub.f32 0.0, %v268
    %v275 = vsel %vm269, %v266, %v272
    %v276 = vsel %vm270, %v267, %v273
    %v277 = vsel %vm271, %v268, %v274
    %v278 = vmul.f32 %v164, 0.5
    %v279 = vmul.f32 %v165, 0.5
    %v280 = vmul.f32 %v166, 0.5
    %v281 = vadd.f32 %v275, 1.0
    %v282 = vadd.f32 %v276, 1.0
    %v283 = vadd.f32 %v277, 1.0
    %v284 = vmul.f32 %v278, %v281
    %v285 = vmul.f32 %v279, %v282
    %v286 = vmul.f32 %v280, %v283
    %v288 = vperm.slane %v70, 0
    %v290 = vmul.f32 %v144, %v288
    %v291 = vmul.f32 %v145, %v288
    %v292 = vmul.f32 %v146, %v288
    %v293 = vsel %vm76, %v290, 0.0
    %294 = vadd.xlane.f32.xlu0 %v293
    %v295 = vpop.xlane.xlu0 %294
    %v296 = vsel %vm76, %v291, 0.0
    %297 = vadd.xlane.f32.xlu0 %v296
    %v298 = vpop.xlane.xlu0 %297
    %v299 = vsel %vm76, %v292, 0.0
    %300 = vadd.xlane.f32.xlu0 %v299
    %v301 = vpop.xlane.xlu0 %300
    %s302 = sld [smem:[#allocation8 + $0x1]]
    %v303 = vstv %s302
    %v304 = vadd.f32 %v295, %v303
    %v305 = vadd.f32 %v298, %v303
    %v306 = vadd.f32 %v301, %v303
    %v307 = vmul.f32 %v304, 0.70710677
    %v308 = vmul.f32 %v305, 0.70710677
    %v309 = vmul.f32 %v306, 0.70710677
    %v310 = vand.u32 2147483647, %v307
    %v311 = vand.u32 2147483647, %v308
    %v312 = vand.u32 2147483647, %v309
    %v313 = vmul.f32 %v310, 0.3275911
    %v314 = vmul.f32 %v311, 0.3275911
    %v315 = vmul.f32 %v312, 0.3275911
    %v316 = vadd.f32 %v313, 1.0
    %v317 = vadd.f32 %v314, 1.0
    %v318 = vadd.f32 %v315, 1.0
    %v319 = vrcp.pop %v316
    %v320 = vmul.f32 %v316, %v319
    %v321 = vsub.f32 1.0, %v320
    %v322 = vmul.f32 %v319, %v321
    %v323 = vadd.f32 %v319, %v322
    %vm324 = vweird.f32 %v316
    %vm325 = vweird.f32 %v319
    %vm326 = vmor %vm324, %vm325
    %v327 = vsel %vm326, %v319, %v323
    %v328 = vand.u32 2147483647, %v316
    %vm329 = vcmp.eq.f32.partialorder %v328, 8.507059e+37
    %v330 = vand.u32 %v316, 2147483648
    %v331 = vor.u32 1.1754944e-38, %v330
    %v332 = vsel %vm329, %v331, %v327
    %v333 = vmul.f32 1.0, %v332
    %v334 = vrcp.pop %v317
    %v335 = vmul.f32 %v317, %v334
    %v336 = vsub.f32 1.0, %v335
    %v337 = vmul.f32 %v334, %v336
    %v338 = vadd.f32 %v334, %v337
    %vm339 = vweird.f32 %v317
    %vm340 = vweird.f32 %v334
    %vm341 = vmor %vm339, %vm340
    %v342 = vsel %vm341, %v334, %v338
    %v343 = vand.u32 2147483647, %v317
    %vm344 = vcmp.eq.f32.partialorder %v343, 8.507059e+37
    %v345 = vand.u32 %v317, 2147483648
    %v346 = vor.u32 1.1754944e-38, %v345
    %v347 = vsel %vm344, %v346, %v342
    %v348 = vmul.f32 1.0, %v347
    %v349 = vrcp.pop %v318
    %v350 = vmul.f32 %v318, %v349
    %v351 = vsub.f32 1.0, %v350
    %v352 = vmul.f32 %v349, %v351
    %v353 = vadd.f32 %v349, %v352
    %vm354 = vweird.f32 %v318
    %vm355 = vweird.f32 %v349
    %vm356 = vmor %vm354, %vm355
    %v357 = vsel %vm356, %v349, %v353
    %v358 = vand.u32 2147483647, %v318
    %vm359 = vcmp.eq.f32.partialorder %v358, 8.507059e+37
    %v360 = vand.u32 %v318, 2147483648
    %v361 = vor.u32 1.1754944e-38, %v360
    %v362 = vsel %vm359, %v361, %v357
    %v363 = vmul.f32 1.0, %v362
    %v364 = vmul.f32 %v333, 1.0614054
    %v365 = vmul.f32 %v348, 1.0614054
    %v366 = vmul.f32 %v363, 1.0614054
    %v367 = vadd.f32 %v364, -1.4531521
    %v368 = vadd.f32 %v365, -1.4531521
    %v369 = vadd.f32 %v366, -1.4531521
    %v370 = vmul.f32 %v333, %v367
    %v371 = vmul.f32 %v348, %v368
    %v372 = vmul.f32 %v363, %v369
    %v373 = vadd.f32 %v370, 1.4214138
    %v374 = vadd.f32 %v371, 1.4214138
    %v375 = vadd.f32 %v372, 1.4214138
    %v376 = vmul.f32 %v333, %v373
    %v377 = vmul.f32 %v348, %v374
    %v378 = vmul.f32 %v363, %v375
    %v379 = vadd.f32 %v376, -0.28449672
    %v380 = vadd.f32 %v377, -0.28449672
    %v381 = vadd.f32 %v378, -0.28449672
    %v382 = vmul.f32 %v333, %v379
    %v383 = vmul.f32 %v348, %v380
    %v384 = vmul.f32 %v363, %v381
    %v385 = vadd.f32 %v382, 0.2548296
    %v386 = vadd.f32 %v383, 0.2548296
    %v387 = vadd.f32 %v384, 0.2548296
    %v388 = vmul.f32 %v333, %v385
    %v389 = vmul.f32 %v348, %v386
    %v390 = vmul.f32 %v363, %v387
    %v391 = vsub.f32 0.0, %v310
    %v392 = vsub.f32 0.0, %v311
    %v393 = vsub.f32 0.0, %v312
    %v394 = vmul.f32 %v391, %v310
    %v395 = vmul.f32 %v392, %v311
    %v396 = vmul.f32 %v393, %v312
    %v397 = vmul.f32 %v394, 1.442695
    %v398 = vpow.pop %v397
    %v399 = vmul.f32 %v395, 1.442695
    %v400 = vpow.pop %v399
    %v401 = vmul.f32 %v396, 1.442695
    %v402 = vpow.pop %v401
    %v403 = vmul.f32 %v388, %v398
    %v404 = vmul.f32 %v389, %v400
    %v405 = vmul.f32 %v390, %v402
    %v406 = vsub.f32 1.0, %v403
    %v407 = vsub.f32 1.0, %v404
    %v408 = vsub.f32 1.0, %v405
    %vm409 = vcmp.ge.f32.partialorder %v307, 0.0
    %vm410 = vcmp.ge.f32.partialorder %v308, 0.0
    %vm411 = vcmp.ge.f32.partialorder %v309, 0.0
    %v412 = vsub.f32 0.0, %v406
    %v413 = vsub.f32 0.0, %v407
    %v414 = vsub.f32 0.0, %v408
    %v415 = vsel %vm409, %v406, %v412
    %v416 = vsel %vm410, %v407, %v413
    %v417 = vsel %vm411, %v408, %v414
    %v418 = vmul.f32 %v304, 0.5
    %v419 = vmul.f32 %v305, 0.5
    %v420 = vmul.f32 %v306, 0.5
    %v421 = vadd.f32 %v415, 1.0
    %v422 = vadd.f32 %v416, 1.0
    %v423 = vadd.f32 %v417, 1.0
    %v424 = vmul.f32 %v418, %v421
    %v425 = vmul.f32 %v419, %v422
    %v426 = vmul.f32 %v420, %v423
    %v428 = vperm.slane %v71, 0
    %v430 = vmul.f32 %v144, %v428
    %v431 = vmul.f32 %v145, %v428
    %v432 = vmul.f32 %v146, %v428
    %v433 = vsel %vm76, %v430, 0.0
    %434 = vadd.xlane.f32.xlu0 %v433
    %v435 = vpop.xlane.xlu0 %434
    %v436 = vsel %vm76, %v431, 0.0
    %437 = vadd.xlane.f32.xlu0 %v436
    %v438 = vpop.xlane.xlu0 %437
    %v439 = vsel %vm76, %v432, 0.0
    %440 = vadd.xlane.f32.xlu0 %v439
    %v441 = vpop.xlane.xlu0 %440
    %s442 = sld [smem:[#allocation8 + $0x2]]
    %v443 = vstv %s442
    %v444 = vadd.f32 %v435, %v443
    %v445 = vadd.f32 %v438, %v443
    %v446 = vadd.f32 %v441, %v443
    %v447 = vmul.f32 %v444, 0.70710677
    %v448 = vmul.f32 %v445, 0.70710677
    %v449 = vmul.f32 %v446, 0.70710677
    %v450 = vand.u32 2147483647, %v447
    %v451 = vand.u32 2147483647, %v448
    %v452 = vand.u32 2147483647, %v449
    %v453 = vmul.f32 %v450, 0.3275911
    %v454 = vmul.f32 %v451, 0.3275911
    %v455 = vmul.f32 %v452, 0.3275911
    %v456 = vadd.f32 %v453, 1.0
    %v457 = vadd.f32 %v454, 1.0
    %v458 = vadd.f32 %v455, 1.0
    %v459 = vrcp.pop %v456
    %v460 = vmul.f32 %v456, %v459
    %v461 = vsub.f32 1.0, %v460
    %v462 = vmul.f32 %v459, %v461
    %v463 = vadd.f32 %v459, %v462
    %vm464 = vweird.f32 %v456
    %vm465 = vweird.f32 %v459
    %vm466 = vmor %vm464, %vm465
    %v467 = vsel %vm466, %v459, %v463
    %v468 = vand.u32 2147483647, %v456
    %vm469 = vcmp.eq.f32.partialorder %v468, 8.507059e+37
    %v470 = vand.u32 %v456, 2147483648
    %v471 = vor.u32 1.1754944e-38, %v470
    %v472 = vsel %vm469, %v471, %v467
    %v473 = vmul.f32 1.0, %v472
    %v474 = vrcp.pop %v457
    %v475 = vmul.f32 %v457, %v474
    %v476 = vsub.f32 1.0, %v475
    %v477 = vmul.f32 %v474, %v476
    %v478 = vadd.f32 %v474, %v477
    %vm479 = vweird.f32 %v457
    %vm480 = vweird.f32 %v474
    %vm481 = vmor %vm479, %vm480
    %v482 = vsel %vm481, %v474, %v478
    %v483 = vand.u32 2147483647, %v457
    %vm484 = vcmp.eq.f32.partialorder %v483, 8.507059e+37
    %v485 = vand.u32 %v457, 2147483648
    %v486 = vor.u32 1.1754944e-38, %v485
    %v487 = vsel %vm484, %v486, %v482
    %v488 = vmul.f32 1.0, %v487
    %v489 = vrcp.pop %v458
    %v490 = vmul.f32 %v458, %v489
    %v491 = vsub.f32 1.0, %v490
    %v492 = vmul.f32 %v489, %v491
    %v493 = vadd.f32 %v489, %v492
    %vm494 = vweird.f32 %v458
    %vm495 = vweird.f32 %v489
    %vm496 = vmor %vm494, %vm495
    %v497 = vsel %vm496, %v489, %v493
    %v498 = vand.u32 2147483647, %v458
    %vm499 = vcmp.eq.f32.partialorder %v498, 8.507059e+37
    %v500 = vand.u32 %v458, 2147483648
    %v501 = vor.u32 1.1754944e-38, %v500
    %v502 = vsel %vm499, %v501, %v497
    %v503 = vmul.f32 1.0, %v502
    %v504 = vmul.f32 %v473, 1.0614054
    %v505 = vmul.f32 %v488, 1.0614054
    %v506 = vmul.f32 %v503, 1.0614054
    %v507 = vadd.f32 %v504, -1.4531521
    %v508 = vadd.f32 %v505, -1.4531521
    %v509 = vadd.f32 %v506, -1.4531521
    %v510 = vmul.f32 %v473, %v507
    %v511 = vmul.f32 %v488, %v508
    %v512 = vmul.f32 %v503, %v509
    %v513 = vadd.f32 %v510, 1.4214138
    %v514 = vadd.f32 %v511, 1.4214138
    %v515 = vadd.f32 %v512, 1.4214138
    %v516 = vmul.f32 %v473, %v513
    %v517 = vmul.f32 %v488, %v514
    %v518 = vmul.f32 %v503, %v515
    %v519 = vadd.f32 %v516, -0.28449672
    %v520 = vadd.f32 %v517, -0.28449672
    %v521 = vadd.f32 %v518, -0.28449672
    %v522 = vmul.f32 %v473, %v519
    %v523 = vmul.f32 %v488, %v520
    %v524 = vmul.f32 %v503, %v521
    %v525 = vadd.f32 %v522, 0.2548296
    %v526 = vadd.f32 %v523, 0.2548296
    %v527 = vadd.f32 %v524, 0.2548296
    %v528 = vmul.f32 %v473, %v525
    %v529 = vmul.f32 %v488, %v526
    %v530 = vmul.f32 %v503, %v527
    %v531 = vsub.f32 0.0, %v450
    %v532 = vsub.f32 0.0, %v451
    %v533 = vsub.f32 0.0, %v452
    %v534 = vmul.f32 %v531, %v450
    %v535 = vmul.f32 %v532, %v451
    %v536 = vmul.f32 %v533, %v452
    %v537 = vmul.f32 %v534, 1.442695
    %v538 = vpow.pop %v537
    %v539 = vmul.f32 %v535, 1.442695
    %v540 = vpow.pop %v539
    %v541 = vmul.f32 %v536, 1.442695
    %v542 = vpow.pop %v541
    %v543 = vmul.f32 %v528, %v538
    %v544 = vmul.f32 %v529, %v540
    %v545 = vmul.f32 %v530, %v542
    %v546 = vsub.f32 1.0, %v543
    %v547 = vsub.f32 1.0, %v544
    %v548 = vsub.f32 1.0, %v545
    %vm549 = vcmp.ge.f32.partialorder %v447, 0.0
    %vm550 = vcmp.ge.f32.partialorder %v448, 0.0
    %vm551 = vcmp.ge.f32.partialorder %v449, 0.0
    %v552 = vsub.f32 0.0, %v546
    %v553 = vsub.f32 0.0, %v547
    %v554 = vsub.f32 0.0, %v548
    %v555 = vsel %vm549, %v546, %v552
    %v556 = vsel %vm550, %v547, %v553
    %v557 = vsel %vm551, %v548, %v554
    %v558 = vmul.f32 %v444, 0.5
    %v559 = vmul.f32 %v445, 0.5
    %v560 = vmul.f32 %v446, 0.5
    %v561 = vadd.f32 %v555, 1.0
    %v562 = vadd.f32 %v556, 1.0
    %v563 = vadd.f32 %v557, 1.0
    %v564 = vmul.f32 %v558, %v561
    %v565 = vmul.f32 %v559, %v562
    %v566 = vmul.f32 %v560, %v563
    %v568 = vperm.slane %v72, 0
    %v570 = vmul.f32 %v568, %v284
    %v571 = vmul.f32 %v568, %v285
    %v572 = vmul.f32 %v568, %v286
    %v574 = vperm.slane %v73, 0
    %v576 = vmul.f32 %v574, %v424
    %v577 = vmul.f32 %v574, %v425
    %v578 = vmul.f32 %v574, %v426
    %v580 = vperm.slane %v74, 0
    %v582 = vmul.f32 %v580, %v564
    %v583 = vmul.f32 %v580, %v565
    %v584 = vmul.f32 %v580, %v566
    %v585 = vadd.f32 %v570, 0.0
    %v586 = vadd.f32 %v571, 0.0
    %v587 = vadd.f32 %v572, 0.0
    %v588 = vadd.f32 %v585, %v576
    %v589 = vadd.f32 %v586, %v577
    %v590 = vadd.f32 %v587, %v578
    %v591 = vadd.f32 %v588, %v582
    %v592 = vadd.f32 %v589, %v583
    %v593 = vadd.f32 %v590, %v584
    %v595 = vperm.slane %v75, 0
    %v597 = vadd.f32 %v595, %v591
    %v598 = vadd.f32 %v595, %v592
    %v599 = vadd.f32 %v595, %v593
    %v600 = vadd.f32 %v597, %v60
    %v601 = vadd.f32 %v598, %v61
    %v602 = vadd.f32 %v599, %v62
    %v603 = vsel %vm76, %v600, 0.0
    %604 = vadd.xlane.f32.xlu0 %v603
    %v605 = vpop.xlane.xlu0 %604
    %v606 = vsel %vm76, %v601, 0.0
    %607 = vadd.xlane.f32.xlu0 %v606
    %v608 = vpop.xlane.xlu0 %607
    %v609 = vsel %vm76, %v602, 0.0
    %610 = vadd.xlane.f32.xlu0 %v609
    %v611 = vpop.xlane.xlu0 %610
    %v612 = vmul.f32 %v600, %v600
    %v613 = vmul.f32 %v601, %v601
    %v614 = vmul.f32 %v602, %v602
    %v615 = vsel %vm76, %v612, 0.0
    %616 = vadd.xlane.f32.xlu0 %v615
    %v617 = vpop.xlane.xlu0 %616
    %v618 = vsel %vm76, %v613, 0.0
    %619 = vadd.xlane.f32.xlu0 %v618
    %v620 = vpop.xlane.xlu0 %619
    %v621 = vsel %vm76, %v614, 0.0
    %622 = vadd.xlane.f32.xlu0 %v621
    %v623 = vpop.xlane.xlu0 %622
    %v624 = vadd.f32 %v605, %v608
    %v625 = vadd.f32 %v624, %v611
    %v626 = vadd.f32 %v617, %v620
    %v627 = vadd.f32 %v626, %v623
    %v628 = vmul.f32 %v625, 0.013333334
    %v629 = vmul.f32 %v627, 0.013333334
    %v630 = vmul.f32 %v628, %v628
    %v631 = vsub.f32 %v629, %v630
    %v632 = vsub.f32 %v600, %v628
    %v633 = vsub.f32 %v601, %v628
    %v634 = vsub.f32 %v602, %v628
    %v635 = vadd.f32 %v631, 1e-05
    %v636 = vrsqrt.pop %v635
    %v637 = vmul.f32 %v636, %v635
    %v638 = vmul.f32 %v637, %v636
    %v639 = vmul.f32 0.5, %v638
    %v640 = vsub.f32 1.5, %v639
    %v641 = vmul.f32 %v636, %v640
    %vm642 = vweird.f32 %v635
    %vm643 = vweird.f32 %v636
    %vm644 = vmor %vm642, %vm643
    %v645 = vsel %vm644, %v636, %v641
    %v646 = vmul.f32 %v632, %v645
    %v647 = vmul.f32 %v633, %v645
    %v648 = vmul.f32 %v634, %v645
    %v649 = vmul.f32 %v646, %v126
    %v650 = vmul.f32 %v647, %v127
    %v651 = vmul.f32 %v648, %v128
    %v652 = vadd.f32 %v649, %v138
    %v653 = vadd.f32 %v650, %v139
    %v654 = vadd.f32 %v651, %v140
    %s655 = sld [smem:[#allocation8 + $0x3]]
    %v656 = vstv %s655
    %v657 = vmul.f32 %v656, %v652
    %s658 = sld [smem:[#allocation8 + $0x4]]
    %v659 = vstv %s658
    %v660 = vmul.f32 %v659, %v653
    %s661 = sld [smem:[#allocation8 + $0x5]]
    %v662 = vstv %s661
    %v663 = vmul.f32 %v662, %v654
    %s664 = sld [smem:[#allocation8 + $0xc]]
    %v665 = vadd.f32 %v657, 0.0
    %v666 = vadd.f32 %v665, %v660
    %v667 = vadd.f32 %v666, %v663
    %v668 = vstv %s664
    %v669 = vadd.f32 %v668, %v667
    %v670 = vmul.f32 %v669, 0.70710677
    %v671 = vand.u32 2147483647, %v670
    %v672 = vmul.f32 %v671, 0.3275911
    %v673 = vadd.f32 %v672, 1.0
    %v674 = vrcp.pop %v673
    %v675 = vmul.f32 %v673, %v674
    %v676 = vsub.f32 1.0, %v675
    %v677 = vmul.f32 %v674, %v676
    %v678 = vadd.f32 %v674, %v677
    %vm679 = vweird.f32 %v673
    %vm680 = vweird.f32 %v674
    %vm681 = vmor %vm679, %vm680
    %v682 = vsel %vm681, %v674, %v678
    %v683 = vand.u32 2147483647, %v673
    %vm684 = vcmp.eq.f32.partialorder %v683, 8.507059e+37
    %v685 = vand.u32 %v673, 2147483648
    %v686 = vor.u32 1.1754944e-38, %v685
    %v687 = vsel %vm684, %v686, %v682
    %v688 = vmul.f32 1.0, %v687
    %v689 = vmul.f32 %v688, 1.0614054
    %v690 = vadd.f32 %v689, -1.4531521
    %v691 = vmul.f32 %v688, %v690
    %v692 = vadd.f32 %v691, 1.4214138
    %v693 = vmul.f32 %v688, %v692
    %v694 = vadd.f32 %v693, -0.28449672
    %v695 = vmul.f32 %v688, %v694
    %v696 = vadd.f32 %v695, 0.2548296
    %v697 = vmul.f32 %v688, %v696
    %v698 = vsub.f32 0.0, %v671
    %v699 = vmul.f32 %v698, %v671
    %v700 = vmul.f32 %v699, 1.442695
    %v701 = vpow.pop %v700
    %v702 = vmul.f32 %v697, %v701
    %v703 = vsub.f32 1.0, %v702
    %vm704 = vcmp.ge.f32.partialorder %v670, 0.0
    %v705 = vsub.f32 0.0, %v703
    %v706 = vsel %vm704, %v703, %v705
    %v707 = vmul.f32 %v669, 0.5
    %v708 = vadd.f32 %v706, 1.0
    %v709 = vmul.f32 %v707, %v708
    %s710 = sld [smem:[#allocation8 + $0x6]]
    %v711 = vstv %s710
    %v712 = vmul.f32 %v711, %v652
    %s713 = sld [smem:[#allocation8 + $0x7]]
    %v714 = vstv %s713
    %v715 = vmul.f32 %v714, %v653
    %s716 = sld [smem:[#allocation8 + $0x8]]
    %v717 = vstv %s716
    %v718 = vmul.f32 %v717, %v654
    %s719 = sld [smem:[#allocation8 + $0xd]]
    %v720 = vadd.f32 %v712, 0.0
    %v721 = vadd.f32 %v720, %v715
    %v722 = vadd.f32 %v721, %v718
    %v723 = vstv %s719
    %v724 = vadd.f32 %v723, %v722
    %v725 = vmul.f32 %v724, 0.70710677
    %v726 = vand.u32 2147483647, %v725
    %v727 = vmul.f32 %v726, 0.3275911
    %v728 = vadd.f32 %v727, 1.0
    %v729 = vrcp.pop %v728
    %v730 = vmul.f32 %v728, %v729
    %v731 = vsub.f32 1.0, %v730
    %v732 = vmul.f32 %v729, %v731
    %v733 = vadd.f32 %v729, %v732
    %vm734 = vweird.f32 %v728
    %vm735 = vweird.f32 %v729
    %vm736 = vmor %vm734, %vm735
    %v737 = vsel %vm736, %v729, %v733
    %v738 = vand.u32 2147483647, %v728
    %vm739 = vcmp.eq.f32.partialorder %v738, 8.507059e+37
    %v740 = vand.u32 %v728, 2147483648
    %v741 = vor.u32 1.1754944e-38, %v740
    %v742 = vsel %vm739, %v741, %v737
    %v743 = vmul.f32 1.0, %v742
    %v744 = vmul.f32 %v743, 1.0614054
    %v745 = vadd.f32 %v744, -1.4531521
    %v746 = vmul.f32 %v743, %v745
    %v747 = vadd.f32 %v746, 1.4214138
    %v748 = vmul.f32 %v743, %v747
    %v749 = vadd.f32 %v748, -0.28449672
    %v750 = vmul.f32 %v743, %v749
    %v751 = vadd.f32 %v750, 0.2548296
    %v752 = vmul.f32 %v743, %v751
    %v753 = vsub.f32 0.0, %v726
    %v754 = vmul.f32 %v753, %v726
    %v755 = vmul.f32 %v754, 1.442695
    %v756 = vpow.pop %v755
    %v757 = vmul.f32 %v752, %v756
    %v758 = vsub.f32 1.0, %v757
    %vm759 = vcmp.ge.f32.partialorder %v725, 0.0
    %v760 = vsub.f32 0.0, %v758
    %v761 = vsel %vm759, %v758, %v760
    %v762 = vmul.f32 %v724, 0.5
    %v763 = vadd.f32 %v761, 1.0
    %v764 = vmul.f32 %v762, %v763
    %s765 = sld [smem:[#allocation8 + $0x9]]
    %v766 = vstv %s765
    %v767 = vmul.f32 %v766, %v652
    %s768 = sld [smem:[#allocation8 + $0xa]]
    %v769 = vstv %s768
    %v770 = vmul.f32 %v769, %v653
    %s771 = sld [smem:[#allocation8 + $0xb]]
    %v772 = vstv %s771
    %v773 = vmul.f32 %v772, %v654
    %s774 = sld [smem:[#allocation8 + $0xe]]
    %v775 = vadd.f32 %v767, 0.0
    %v776 = vadd.f32 %v775, %v770
    %v777 = vadd.f32 %v776, %v773
    %v778 = vstv %s774
    %v779 = vadd.f32 %v778, %v777
    %v780 = vmul.f32 %v779, 0.70710677
    %v781 = vand.u32 2147483647, %v780
    %v782 = vmul.f32 %v781, 0.3275911
    %v783 = vadd.f32 %v782, 1.0
    %v784 = vrcp.pop %v783
    %v785 = vmul.f32 %v783, %v784
    %v786 = vsub.f32 1.0, %v785
    %v787 = vmul.f32 %v784, %v786
    %v788 = vadd.f32 %v784, %v787
    %vm789 = vweird.f32 %v783
    %vm790 = vweird.f32 %v784
    %vm791 = vmor %vm789, %vm790
    %v792 = vsel %vm791, %v784, %v788
    %v793 = vand.u32 2147483647, %v783
    %vm794 = vcmp.eq.f32.partialorder %v793, 8.507059e+37
    %v795 = vand.u32 %v783, 2147483648
    %v796 = vor.u32 1.1754944e-38, %v795
    %v797 = vsel %vm794, %v796, %v792
    %v798 = vmul.f32 1.0, %v797
    %v799 = vmul.f32 %v798, 1.0614054
    %v800 = vadd.f32 %v799, -1.4531521
    %v801 = vmul.f32 %v798, %v800
    %v802 = vadd.f32 %v801, 1.4214138
    %v803 = vmul.f32 %v798, %v802
    %v804 = vadd.f32 %v803, -0.28449672
    %v805 = vmul.f32 %v798, %v804
    %v806 = vadd.f32 %v805, 0.2548296
    %v807 = vmul.f32 %v798, %v806
    %v808 = vsub.f32 0.0, %v781
    %v809 = vmul.f32 %v808, %v781
    %v810 = vmul.f32 %v809, 1.442695
    %v811 = vpow.pop %v810
    %v812 = vmul.f32 %v807, %v811
    %v813 = vsub.f32 1.0, %v812
    %vm814 = vcmp.ge.f32.partialorder %v780, 0.0
    %v815 = vsub.f32 0.0, %v813
    %v816 = vsel %vm814, %v813, %v815
    %v817 = vmul.f32 %v779, 0.5
    %v818 = vadd.f32 %v816, 1.0
    %v819 = vmul.f32 %v817, %v818
    %s820 = sld [smem:[#allocation8 + $0xf]]
    %v821 = vstv %s820
    %v822 = vmul.f32 %v821, %v709
    %s823 = sld [smem:[#allocation8 + $0x10]]
    %v824 = vstv %s823
    %v825 = vmul.f32 %v824, %v764
    %s826 = sld [smem:[#allocation8 + $0x11]]
    %v827 = vstv %s826
    %v828 = vmul.f32 %v827, %v819
    %s829 = sld [smem:[#allocation8 + $0x18]]
    %v830 = vadd.f32 %v822, 0.0
    %v831 = vadd.f32 %v830, %v825
    %v832 = vadd.f32 %v831, %v828
    %v833 = vstv %s829
    %v834 = vadd.f32 %v833, %v832
    %v835 = vadd.f32 %v600, %v834
    %836 = vst.msk [vmem:[#allocation9] sm:$0xff] %vm76, %v835
    %s837 = sld [smem:[#allocation8 + $0x12]]
    %v838 = vstv %s837
    %v839 = vmul.f32 %v838, %v709
    %s840 = sld [smem:[#allocation8 + $0x13]]
    %v841 = vstv %s840
    %v842 = vmul.f32 %v841, %v764
    %s843 = sld [smem:[#allocation8 + $0x14]]
    %v844 = vstv %s843
    %v845 = vmul.f32 %v844, %v819
    %s846 = sld [smem:[#allocation8 + $0x19]]
    %v847 = vadd.f32 %v839, 0.0
    %v848 = vadd.f32 %v847, %v842
    %v849 = vadd.f32 %v848, %v845
    %v850 = vstv %s846
    %v851 = vadd.f32 %v850, %v849
    %v852 = vadd.f32 %v601, %v851
    %s853 = scalar_lea.vmem [#allocation9], 8
    %854 = vst.msk [vmem:[%s853] sm:$0xff] %vm76, %v852
    %s855 = sld [smem:[#allocation8 + $0x15]]
    %v856 = vstv %s855
    %v857 = vmul.f32 %v856, %v709
    %s858 = sld [smem:[#allocation8 + $0x16]]
    %v859 = vstv %s858
    %v860 = vmul.f32 %v859, %v764
    %s861 = sld [smem:[#allocation8 + $0x17]]
    %v862 = vstv %s861
    %v863 = vmul.f32 %v862, %v819
    %s864 = sld [smem:[#allocation8 + $0x1a]]
    %v865 = vadd.f32 %v857, 0.0
    %v866 = vadd.f32 %v865, %v860
    %v867 = vadd.f32 %v866, %v863
    %v868 = vstv %s864
    %v869 = vadd.f32 %v868, %v867
    %v870 = vadd.f32 %v602, %v869
    %s871 = scalar_lea.vmem [#allocation9], 16
    %872 = vst.msk [vmem:[%s871] sm:$0xff] %vm76, %v870
    // Predicated region
    $region26: #{tpu_custom_call.1} parent=1 // pred_check
      _
    $region27: #{tpu_custom_call.1} parent=1 // pred_check_branch
      %874 = sbr.rel (0) target = $region29
    $region28: #{tpu_custom_call.1} parent=1 // pred_region
      %876 = vsyncadd [#allocation4], 0
      %s877 = sshll.u32 [#allocation9], 4
      %s878 = int_to_ptr.vmem [resolvable:$true] %s877
      %s879 = sshll.u32 %s3, 4
      %s880 = int_to_ptr.hbm [resolvable:$true] %s879
      %885 = dma.vmem_to_hbm [thread:$0]  %s878, 384, %s880, [#allocation4], 128, 128, 8
    $region29: #{tpu_custom_call.1} parent=1 // pred_fallthru
      _
    // Predicated region
    $region30: #{tpu_custom_call.1} parent=1 // pred_check
      _
    $region31: #{tpu_custom_call.1} parent=1 // pred_check_branch
      %887 = sbr.rel (0) target = $region33
    $region32: #{tpu_custom_call.1} parent=1 // pred_region
      %889 = dma.done [#allocation4], 384
    $region33: #{tpu_custom_call.1} parent=1 // pred_fallthru
      _
    %890 = vsyncpa [#allocation3], 1
    %891 = vsyncpa [#allocation7], 1
    %892 = vsyncpa [#allocation4], 1
    %893 = vsyncpa [#allocation5], 1

</llo_original>
